<compile_context>
chip_gen: v7x
topology: tpu7x:2x2x1
jax: 0.10.0
libtpu: 0.0.40
codegen_flags: <defaults>
</compile_context>

<pallas_src>
import jax
import jax.numpy as jnp
from jax.experimental import pallas as pl
from jax.experimental.pallas import tpu as pltpu

_LANE = 128
_SUB_BF16 = 16  # bf16 vregs pack (16, 128); keep batch tiles a multiple of 16.


def _round_up(n, m):
    return ((n + m - 1) // m) * m


def actor_kernel(x_ref, w1_ref, b1_ref, w2_ref, b2_ref,
                 w3_ref, b3_ref, w4_ref, b4_ref, probs_ref):
    # x arrives f32 from HBM; cast to bf16 just before the MXU (hidden under it).
    x = x_ref[...].astype(jnp.bfloat16)

    h = jnp.dot(x, w1_ref[...], preferred_element_type=jnp.float32) + b1_ref[...]
    h = jnp.maximum(h, 0.0)

    h = jnp.dot(h.astype(jnp.bfloat16), w2_ref[...],
                preferred_element_type=jnp.float32) + b2_ref[...]
    h = jnp.maximum(h, 0.0)

    h = jnp.dot(h.astype(jnp.bfloat16), w3_ref[...],
                preferred_element_type=jnp.float32) + b3_ref[...]
    h = jnp.maximum(h, 0.0)

    # b4's lane-padding columns were pre-filled with -1e30 in the wrapper, so
    # pad logits underflow to exactly 0 after exp -> no explicit iota/where mask.
    logits = jnp.dot(h.astype(jnp.bfloat16), w4_ref[...],
                     preferred_element_type=jnp.float32) + b4_ref[...]

    # Numerically-stable softmax over the last axis (matches F.softmax dim=-1).
    m = jnp.max(logits, axis=-1, keepdims=True)
    e = jnp.exp(logits - m)
    denom = jnp.sum(e, axis=-1, keepdims=True)
    # Exact divide: Categorical log_prob/entropy may be computed downstream.
    probs_ref[...] = (e / denom).astype(probs_ref.dtype)


def prepare_actor_params(params):
    """Pad feature dims to lane multiples, cast weights to bf16, bake the
    softmax mask (-1e30) into b4's pad lanes.  Do this once per set of weights
    (inference) rather than on every forward call."""
    w1, b1 = params["w1"], params["b1"]
    w2, b2 = params["w2"], params["b2"]
    w3, b3 = params["w3"], params["b3"]
    w4, b4 = params["w4"], params["b4"]

    d_in, h1 = w1.shape
    h2 = w3.shape[1]
    d_out = w4.shape[1]

    d_in_p = _round_up(d_in, _LANE)
    h1_p = _round_up(h1, _LANE)
    h2_p = _round_up(h2, _LANE)
    d_out_p = _round_up(d_out, _LANE)

    def pad_w(w, shape):
        pads = [(0, t - s) for s, t in zip(w.shape, shape)]
        return jnp.pad(w, pads).astype(jnp.bfloat16)

    def pad_b(b, n, fill=0.0):
        b = jnp.reshape(b, (1, -1)).astype(jnp.float32)
        return jnp.pad(b, ((0, 0), (0, n - b.shape[1])), constant_values=fill)

    return {
        "_prepared": True,
        "dims": (d_in, h1, h2, d_out),
        "pdims": (d_in_p, h1_p, h2_p, d_out_p),
        "w1": pad_w(w1, (d_in_p, h1_p)), "b1": pad_b(b1, h1_p),
        "w2": pad_w(w2, (h1_p, h1_p)),   "b2": pad_b(b2, h1_p),
        "w3": pad_w(w3, (h1_p, h2_p)),   "b3": pad_b(b3, h2_p),
        "w4": pad_w(w4, (h2_p, d_out_p)),
        # Pad lanes at -1e30 -> they vanish in the softmax with no in-kernel mask.
        "b4": pad_b(b4, d_out_p, fill=-1e30),
    }


def actor_forward(x, params, *, batch_tile=512):
    """Run the Actor MLP + softmax as one Pallas kernel.

    x: (B, input_dim) float32
    params: raw dict with w1,b1,...,w4,b4 (f32, weights (in, out)) or the
            output of prepare_actor_params().
    returns probs: (B, output_dim) float32
    """
    prep = params if params.get("_prepared", False) else prepare_actor_params(params)
    d_in, h1, h2, d_out = prep["dims"]
    d_in_p, h1_p, h2_p, d_out_p = prep["pdims"]

    B = x.shape[0]
    assert x.shape[1] == d_in

    # Batch tile: multiple of 16 (bf16 packing).  Split B into >= 2 tiles when
    # possible so the "parallel" axis shards across v7x's two TensorCores and
    # the x/out DMAs get software-pipelined; cap at batch_tile for large B.
    tb = min(batch_tile, max(_SUB_BF16, _round_up(pl.cdiv(B, 2), _SUB_BF16)))
    B_p = _round_up(B, tb)
    grid = (B_p // tb,)

    # Keep x in f32 (single 4 B/elem HBM read, no extra bf16 copy); pad only
    # when the shapes actually require it.
    x_p = x.astype(jnp.float32)
    if (B_p, d_in_p) != tuple(x_p.shape):
        x_p = jnp.pad(x_p, ((0, B_p - B), (0, d_in_p - d_in)))

    w_args = (prep["w1"], prep["b1"], prep["w2"], prep["b2"],
              prep["w3"], prep["b3"], prep["w4"], prep["b4"])

    flops = 2 * B_p * (d_in_p * h1_p + h1_p * h1_p + h1_p * h2_p + h2_p * d_out_p)
    w_bytes = sum(int(a.size) * a.dtype.itemsize for a in w_args)
    bytes_accessed = int(x_p.size) * 4 + w_bytes + B_p * d_out_p * 4
    cost = pl.CostEstimate(flops=flops,
                           transcendentals=B_p * d_out_p,
                           bytes_accessed=bytes_accessed)

    # x / out tiles are double-buffered by the auto-pipeliner.
    io_bytes = 2 * tb * (d_in_p * 4 + d_out_p * 4)

    def build(single_buffer_weights):
        def const_spec(arr):
            shape = arr.shape
            idx_map = lambda i, _s=shape: (0,) * len(_s)
            if single_buffer_weights:
                # Grid-invariant weights/biases don't need the default 2nd buffer.
                return pl.BlockSpec(shape, idx_map, pipeline_mode=pl.Buffered(1))
            return pl.BlockSpec(shape, idx_map)

        buf_mult = 1 if single_buffer_weights else 2
        vmem_est = io_bytes + buf_mult * w_bytes + (2 << 20)
        vmem_limit = min(vmem_est, 128 << 20) if vmem_est > (32 << 20) else None
        # TODO(synk): if bf16 weights alone approach v7x's 64 MiB VMEM (hidden
        # ~2K), add a grid axis tiling w3's K/N instead of keeping every weight
        # fully resident.
        return pl.pallas_call(
            actor_kernel,
            out_shape=jax.ShapeDtypeStruct((B_p, d_out_p), jnp.float32),
            grid_spec=pltpu.PrefetchScalarGridSpec(
                num_scalar_prefetch=0,
                grid=grid,
                in_specs=[pl.BlockSpec((tb, d_in_p), lambda i: (i, 0))]
                         + [const_spec(a) for a in w_args],
                out_specs=pl.BlockSpec((tb, d_out_p), lambda i: (i, 0)),
            ),
            compiler_params=pltpu.CompilerParams(
                dimension_semantics=("parallel",),
                vmem_limit_bytes=vmem_limit),
            cost_estimate=cost,
        )

    try:
        probs_p = build(True)(x_p, *w_args)
    except Exception:
        # pipeline_mode=pl.Buffered(1) not supported on this jax build ->
        # fall back to default double-buffered specs (same semantics).
        probs_p = build(False)(x_p, *w_args)

    # Strip batch / lane padding.
    return probs_p[:B, :d_out]


def init_actor_params(key, input_dim, hidden_dim, output_dim):
    """Deterministic init mimicking nn.Linear default (U[-1/sqrt(fan_in), +])."""
    dims = [
        (input_dim, hidden_dim),        # fc1
        (hidden_dim, hidden_dim),       # fc2
        (hidden_dim, hidden_dim * 2),   # fc3
        (hidden_dim * 2, output_dim),   # fc4
    ]
    params = {}
    keys = jax.random.split(key, 2 * len(dims))
    for idx, (fan_in, fan_out) in enumerate(dims):
        bound = 1.0 / (fan_in ** 0.5)
        w = jax.random.uniform(keys[2 * idx], (fan_in, fan_out),
                               minval=-bound, maxval=bound, dtype=jnp.float32)
        b = jax.random.uniform(keys[2 * idx + 1], (1, fan_out),
                               minval=-bound, maxval=bound, dtype=jnp.float32)
        params[f"w{idx + 1}"] = w
        params[f"b{idx + 1}"] = b
    return params


def actor_reference(x, params):
    """Pure-JAX f32 reference for sanity checking."""
    h = jnp.maximum(x @ params["w1"] + params["b1"], 0.0)
    h = jnp.maximum(h @ params["w2"] + params["b2"], 0.0)
    h = jnp.maximum(h @ params["w3"] + params["b3"], 0.0)
    logits = h @ params["w4"] + params["b4"]
    return jax.nn.softmax(logits, axis=-1)


if __name__ == "__main__":
    key = jax.random.PRNGKey(0)
    k_params, k_x = jax.random.split(key)

    batch = 8
    input_dim = 16
    hidden_dim = 32
    output_dim = 8

    params = init_actor_params(k_params, input_dim, hidden_dim, output_dim)
    x = jax.random.normal(k_x, (batch, input_dim), dtype=jnp.float32)

    probs = actor_forward(x, params)
    probs = jax.block_until_ready(probs)

    ref = actor_reference(x, params)
    assert probs.shape == (batch, output_dim)
    # Rows of the softmax must sum to 1 (exact divide in-kernel).
    assert jnp.allclose(jnp.sum(probs, axis=-1), 1.0, atol=1e-4)
    # bf16 weights/activations with f32 accumulation vs. pure-f32 reference.
    assert jnp.allclose(probs, ref, atol=2e-2, rtol=2e-2)
    assert bool(jnp.all(probs >= 0.0))

    print("KERNEL_OK")
</pallas_src>

<mosaic_0001>
module attributes {stable_mosaic.version = 11 : i64} {
  func.func @actor_kernel(%arg0: i32, %arg1: memref<16x128xf32, #tpu.memory_space<vmem>>, %arg2: memref<128x128xbf16, #tpu.memory_space<vmem>>, %arg3: memref<1x128xf32, #tpu.memory_space<vmem>>, %arg4: memref<128x128xbf16, #tpu.memory_space<vmem>>, %arg5: memref<1x128xf32, #tpu.memory_space<vmem>>, %arg6: memref<128x128xbf16, #tpu.memory_space<vmem>>, %arg7: memref<1x128xf32, #tpu.memory_space<vmem>>, %arg8: memref<128x128xbf16, #tpu.memory_space<vmem>>, %arg9: memref<1x128xf32, #tpu.memory_space<vmem>>, %arg10: memref<16x128xf32, #tpu.memory_space<vmem>>) attributes {dimension_semantics = [#tpu.dimension_semantics<parallel>], iteration_bounds = array<i64: 1>, scalar_prefetch = 0 : i64, scratch_operands = 0 : i64, tpu.core_type = #tpu.core_type<tc>, window_params = [{transform_indices = @transform_0, window_bounds = array<i64: 16, 128>}, {pipeline_mode = #tpu.pipeline_mode<synchronous>, transform_indices = @transform_1, window_bounds = array<i64: 128, 128>}, {pipeline_mode = #tpu.pipeline_mode<synchronous>, transform_indices = @transform_2, window_bounds = array<i64: 1, 128>}, {pipeline_mode = #tpu.pipeline_mode<synchronous>, transform_indices = @transform_3, window_bounds = array<i64: 128, 128>}, {pipeline_mode = #tpu.pipeline_mode<synchronous>, transform_indices = @transform_4, window_bounds = array<i64: 1, 128>}, {pipeline_mode = #tpu.pipeline_mode<synchronous>, transform_indices = @transform_5, window_bounds = array<i64: 128, 128>}, {pipeline_mode = #tpu.pipeline_mode<synchronous>, transform_indices = @transform_6, window_bounds = array<i64: 1, 128>}, {pipeline_mode = #tpu.pipeline_mode<synchronous>, transform_indices = @transform_7, window_bounds = array<i64: 128, 128>}, {pipeline_mode = #tpu.pipeline_mode<synchronous>, transform_indices = @transform_8, window_bounds = array<i64: 1, 128>}, {transform_indices = @transform_9, window_bounds = array<i64: 16, 128>}]} {
    %c0 = arith.constant 0 : index
    %c0_0 = arith.constant 0 : index
    %0 = vector.load %arg1[%c0, %c0_0] : memref<16x128xf32, #tpu.memory_space<vmem>>, vector<16x128xf32>
    %1 = arith.truncf %0 : vector<16x128xf32> to vector<16x128xbf16>
    %c0_1 = arith.constant 0 : index
    %c0_2 = arith.constant 0 : index
    %2 = vector.load %arg2[%c0_1, %c0_2] : memref<128x128xbf16, #tpu.memory_space<vmem>>, vector<128x128xbf16>
    %cst = arith.constant dense<0.000000e+00> : vector<16x128xf32>
    %3 = tpu.matmul %1, %2, %cst {dimension_numbers = #tpu.dot_dimension_numbers<[1], [0], [0], [1], [0, 0, 1, 1], [], []>} : vector<16x128xbf16>, vector<128x128xbf16>, vector<16x128xf32> -> vector<16x128xf32>
    %c0_3 = arith.constant 0 : index
    %c0_4 = arith.constant 0 : index
    %4 = vector.load %arg3[%c0_3, %c0_4] : memref<1x128xf32, #tpu.memory_space<vmem>>, vector<1x128xf32>
    %5 = vector.broadcast %4 : vector<1x128xf32> to vector<16x128xf32>
    %6 = arith.addf %3, %5 : vector<16x128xf32>
    %cst_5 = arith.constant 0.000000e+00 : f32
    %7 = vector.broadcast %cst_5 : f32 to vector<16x128xf32>
    %8 = arith.maximumf %6, %7 : vector<16x128xf32>
    %9 = arith.truncf %8 : vector<16x128xf32> to vector<16x128xbf16>
    %c0_6 = arith.constant 0 : index
    %c0_7 = arith.constant 0 : index
    %10 = vector.load %arg4[%c0_6, %c0_7] : memref<128x128xbf16, #tpu.memory_space<vmem>>, vector<128x128xbf16>
    %cst_8 = arith.constant dense<0.000000e+00> : vector<16x128xf32>
    %11 = tpu.matmul %9, %10, %cst_8 {dimension_numbers = #tpu.dot_dimension_numbers<[1], [0], [0], [1], [0, 0, 1, 1], [], []>} : vector<16x128xbf16>, vector<128x128xbf16>, vector<16x128xf32> -> vector<16x128xf32>
    %c0_9 = arith.constant 0 : index
    %c0_10 = arith.constant 0 : index
    %12 = vector.load %arg5[%c0_9, %c0_10] : memref<1x128xf32, #tpu.memory_space<vmem>>, vector<1x128xf32>
    %13 = vector.broadcast %12 : vector<1x128xf32> to vector<16x128xf32>
    %14 = arith.addf %11, %13 : vector<16x128xf32>
    %cst_11 = arith.constant 0.000000e+00 : f32
    %15 = vector.broadcast %cst_11 : f32 to vector<16x128xf32>
    %16 = arith.maximumf %14, %15 : vector<16x128xf32>
    %17 = arith.truncf %16 : vector<16x128xf32> to vector<16x128xbf16>
    %c0_12 = arith.constant 0 : index
    %c0_13 = arith.constant 0 : index
    %18 = vector.load %arg6[%c0_12, %c0_13] : memref<128x128xbf16, #tpu.memory_space<vmem>>, vector<128x128xbf16>
    %cst_14 = arith.constant dense<0.000000e+00> : vector<16x128xf32>
    %19 = tpu.matmul %17, %18, %cst_14 {dimension_numbers = #tpu.dot_dimension_numbers<[1], [0], [0], [1], [0, 0, 1, 1], [], []>} : vector<16x128xbf16>, vector<128x128xbf16>, vector<16x128xf32> -> vector<16x128xf32>
    %c0_15 = arith.constant 0 : index
    %c0_16 = arith.constant 0 : index
    %20 = vector.load %arg7[%c0_15, %c0_16] : memref<1x128xf32, #tpu.memory_space<vmem>>, vector<1x128xf32>
    %21 = vector.broadcast %20 : vector<1x128xf32> to vector<16x128xf32>
    %22 = arith.addf %19, %21 : vector<16x128xf32>
    %cst_17 = arith.constant 0.000000e+00 : f32
    %23 = vector.broadcast %cst_17 : f32 to vector<16x128xf32>
    %24 = arith.maximumf %22, %23 : vector<16x128xf32>
    %25 = arith.truncf %24 : vector<16x128xf32> to vector<16x128xbf16>
    %c0_18 = arith.constant 0 : index
    %c0_19 = arith.constant 0 : index
    %26 = vector.load %arg8[%c0_18, %c0_19] : memref<128x128xbf16, #tpu.memory_space<vmem>>, vector<128x128xbf16>
    %cst_20 = arith.constant dense<0.000000e+00> : vector<16x128xf32>
    %27 = tpu.matmul %25, %26, %cst_20 {dimension_numbers = #tpu.dot_dimension_numbers<[1], [0], [0], [1], [0, 0, 1, 1], [], []>} : vector<16x128xbf16>, vector<128x128xbf16>, vector<16x128xf32> -> vector<16x128xf32>
    %c0_21 = arith.constant 0 : index
    %c0_22 = arith.constant 0 : index
    %28 = vector.load %arg9[%c0_21, %c0_22] : memref<1x128xf32, #tpu.memory_space<vmem>>, vector<1x128xf32>
    %29 = vector.broadcast %28 : vector<1x128xf32> to vector<16x128xf32>
    %30 = arith.addf %27, %29 : vector<16x128xf32>
    %cst_23 = arith.constant dense<0xFF800000> : vector<16xf32>
    %31 = vector.multi_reduction <maximumf>, %30, %cst_23 [1] : vector<16x128xf32> to vector<16xf32>
    %32 = vector.shape_cast %31 : vector<16xf32> to vector<16x1xf32>
    %33 = vector.broadcast %32 : vector<16x1xf32> to vector<16x128xf32>
    %34 = arith.subf %30, %33 : vector<16x128xf32>
    %35 = math.exp %34 : vector<16x128xf32>
    %cst_24 = arith.constant dense<0.000000e+00> : vector<16xf32>
    %36 = vector.multi_reduction <add>, %35, %cst_24 [1] : vector<16x128xf32> to vector<16xf32>
    %37 = vector.shape_cast %36 : vector<16xf32> to vector<16x1xf32>
    %38 = vector.broadcast %37 : vector<16x1xf32> to vector<16x128xf32>
    %39 = arith.divf %35, %38 : vector<16x128xf32>
    %c0_25 = arith.constant 0 : index
    %c0_26 = arith.constant 0 : index
    %40 = vector.load %arg10[%c0_25, %c0_26] : memref<16x128xf32, #tpu.memory_space<vmem>>, vector<16x128xf32>
    tpu.vector_store %arg10[%c0_25, %c0_26], %39 {strides = array<i32>} : memref<16x128xf32, #tpu.memory_space<vmem>>, vector<16x128xf32>,
    return
  }
  func.func @transform_0(%arg0: i32) -> (i32, i32) {
    %c0_i32 = arith.constant 0 : i32
    %c0_i32_0 = arith.constant 0 : i32
    return %arg0, %c0_i32 : i32, i32
  }
  func.func @transform_1(%arg0: i32) -> (i32, i32) {
    %c0_i32 = arith.constant 0 : i32
    %c0_i32_0 = arith.constant 0 : i32
    %c0_i32_1 = arith.constant 0 : i32
    return %c0_i32, %c0_i32_0 : i32, i32
  }
  func.func @transform_2(%arg0: i32) -> (i32, i32) {
    %c0_i32 = arith.constant 0 : i32
    %c0_i32_0 = arith.constant 0 : i32
    %c0_i32_1 = arith.constant 0 : i32
    return %c0_i32, %c0_i32_0 : i32, i32
  }
  func.func @transform_3(%arg0: i32) -> (i32, i32) {
    %c0_i32 = arith.constant 0 : i32
    %c0_i32_0 = arith.constant 0 : i32
    %c0_i32_1 = arith.constant 0 : i32
    return %c0_i32, %c0_i32_0 : i32, i32
  }
  func.func @transform_4(%arg0: i32) -> (i32, i32) {
    %c0_i32 = arith.constant 0 : i32
    %c0_i32_0 = arith.constant 0 : i32
    %c0_i32_1 = arith.constant 0 : i32
    return %c0_i32, %c0_i32_0 : i32, i32
  }
  func.func @transform_5(%arg0: i32) -> (i32, i32) {
    %c0_i32 = arith.constant 0 : i32
    %c0_i32_0 = arith.constant 0 : i32
    %c0_i32_1 = arith.constant 0 : i32
    return %c0_i32, %c0_i32_0 : i32, i32
  }
  func.func @transform_6(%arg0: i32) -> (i32, i32) {
    %c0_i32 = arith.constant 0 : i32
    %c0_i32_0 = arith.constant 0 : i32
    %c0_i32_1 = arith.constant 0 : i32
    return %c0_i32, %c0_i32_0 : i32, i32
  }
  func.func @transform_7(%arg0: i32) -> (i32, i32) {
    %c0_i32 = arith.constant 0 : i32
    %c0_i32_0 = arith.constant 0 : i32
    %c0_i32_1 = arith.constant 0 : i32
    return %c0_i32, %c0_i32_0 : i32, i32
  }
  func.func @transform_8(%arg0: i32) -> (i32, i32) {
    %c0_i32 = arith.constant 0 : i32
    %c0_i32_0 = arith.constant 0 : i32
    %c0_i32_1 = arith.constant 0 : i32
    return %c0_i32, %c0_i32_0 : i32, i32
  }
  func.func @transform_9(%arg0: i32) -> (i32, i32) {
    %c0_i32 = arith.constant 0 : i32
    %c0_i32_0 = arith.constant 0 : i32
    return %arg0, %c0_i32 : i32, i32
  }
}

module attributes {stable_mosaic.version = 11 : i64} {
  func.func @actor_kernel(%arg0: i32, %arg1: memref<16x128xf32, #tpu.memory_space<vmem>>, %arg2: memref<128x128xbf16, #tpu.memory_space<vmem>>, %arg3: memref<1x128xf32, #tpu.memory_space<vmem>>, %arg4: memref<128x128xbf16, #tpu.memory_space<vmem>>, %arg5: memref<1x128xf32, #tpu.memory_space<vmem>>, %arg6: memref<128x128xbf16, #tpu.memory_space<vmem>>, %arg7: memref<1x128xf32, #tpu.memory_space<vmem>>, %arg8: memref<128x128xbf16, #tpu.memory_space<vmem>>, %arg9: memref<1x128xf32, #tpu.memory_space<vmem>>, %arg10: memref<16x128xf32, #tpu.memory_space<vmem>>) attributes {dimension_semantics = [#tpu.dimension_semantics<parallel>], iteration_bounds = array<i64: 1>, scalar_prefetch = 0 : i64, scratch_operands = 0 : i64, tpu.core_type = #tpu.core_type<tc>, window_params = [{transform_indices = @transform_0, window_bounds = array<i64: 16, 128>}, {pipeline_mode = #tpu.pipeline_mode<synchronous>, transform_indices = @transform_1, window_bounds = array<i64: 128, 128>}, {pipeline_mode = #tpu.pipeline_mode<synchronous>, transform_indices = @transform_2, window_bounds = array<i64: 1, 128>}, {pipeline_mode = #tpu.pipeline_mode<synchronous>, transform_indices = @transform_3, window_bounds = array<i64: 128, 128>}, {pipeline_mode = #tpu.pipeline_mode<synchronous>, transform_indices = @transform_4, window_bounds = array<i64: 1, 128>}, {pipeline_mode = #tpu.pipeline_mode<synchronous>, transform_indices = @transform_5, window_bounds = array<i64: 128, 128>}, {pipeline_mode = #tpu.pipeline_mode<synchronous>, transform_indices = @transform_6, window_bounds = array<i64: 1, 128>}, {pipeline_mode = #tpu.pipeline_mode<synchronous>, transform_indices = @transform_7, window_bounds = array<i64: 128, 128>}, {pipeline_mode = #tpu.pipeline_mode<synchronous>, transform_indices = @transform_8, window_bounds = array<i64: 1, 128>}, {transform_indices = @transform_9, window_bounds = array<i64: 16, 128>}]} {
    %c0 = arith.constant 0 : index
    %c0_0 = arith.constant 0 : index
    %0 = vector.load %arg1[%c0, %c0_0] : memref<16x128xf32, #tpu.memory_space<vmem>>, vector<16x128xf32>
    %1 = arith.truncf %0 : vector<16x128xf32> to vector<16x128xbf16>
    %c0_1 = arith.constant 0 : index
    %c0_2 = arith.constant 0 : index
    %2 = vector.load %arg2[%c0_1, %c0_2] : memref<128x128xbf16, #tpu.memory_space<vmem>>, vector<128x128xbf16>
    %cst = arith.constant dense<0.000000e+00> : vector<16x128xf32>
    %3 = tpu.matmul %1, %2, %cst {dimension_numbers = #tpu.dot_dimension_numbers<[1], [0], [0], [1], [0, 0, 1, 1], [], []>} : vector<16x128xbf16>, vector<128x128xbf16>, vector<16x128xf32> -> vector<16x128xf32>
    %c0_3 = arith.constant 0 : index
    %c0_4 = arith.constant 0 : index
    %4 = vector.load %arg3[%c0_3, %c0_4] : memref<1x128xf32, #tpu.memory_space<vmem>>, vector<1x128xf32>
    %5 = vector.broadcast %4 : vector<1x128xf32> to vector<16x128xf32>
    %6 = arith.addf %3, %5 : vector<16x128xf32>
    %cst_5 = arith.constant 0.000000e+00 : f32
    %7 = vector.broadcast %cst_5 : f32 to vector<16x128xf32>
    %8 = arith.maximumf %6, %7 : vector<16x128xf32>
    %9 = arith.truncf %8 : vector<16x128xf32> to vector<16x128xbf16>
    %c0_6 = arith.constant 0 : index
    %c0_7 = arith.constant 0 : index
    %10 = vector.load %arg4[%c0_6, %c0_7] : memref<128x128xbf16, #tpu.memory_space<vmem>>, vector<128x128xbf16>
    %cst_8 = arith.constant dense<0.000000e+00> : vector<16x128xf32>
    %11 = tpu.matmul %9, %10, %cst_8 {dimension_numbers = #tpu.dot_dimension_numbers<[1], [0], [0], [1], [0, 0, 1, 1], [], []>} : vector<16x128xbf16>, vector<128x128xbf16>, vector<16x128xf32> -> vector<16x128xf32>
    %c0_9 = arith.constant 0 : index
    %c0_10 = arith.constant 0 : index
    %12 = vector.load %arg5[%c0_9, %c0_10] : memref<1x128xf32, #tpu.memory_space<vmem>>, vector<1x128xf32>
    %13 = vector.broadcast %12 : vector<1x128xf32> to vector<16x128xf32>
    %14 = arith.addf %11, %13 : vector<16x128xf32>
    %cst_11 = arith.constant 0.000000e+00 : f32
    %15 = vector.broadcast %cst_11 : f32 to vector<16x128xf32>
    %16 = arith.maximumf %14, %15 : vector<16x128xf32>
    %17 = arith.truncf %16 : vector<16x128xf32> to vector<16x128xbf16>
    %c0_12 = arith.constant 0 : index
    %c0_13 = arith.constant 0 : index
    %18 = vector.load %arg6[%c0_12, %c0_13] : memref<128x128xbf16, #tpu.memory_space<vmem>>, vector<128x128xbf16>
    %cst_14 = arith.constant dense<0.000000e+00> : vector<16x128xf32>
    %19 = tpu.matmul %17, %18, %cst_14 {dimension_numbers = #tpu.dot_dimension_numbers<[1], [0], [0], [1], [0, 0, 1, 1], [], []>} : vector<16x128xbf16>, vector<128x128xbf16>, vector<16x128xf32> -> vector<16x128xf32>
    %c0_15 = arith.constant 0 : index
    %c0_16 = arith.constant 0 : index
    %20 = vector.load %arg7[%c0_15, %c0_16] : memref<1x128xf32, #tpu.memory_space<vmem>>, vector<1x128xf32>
    %21 = vector.broadcast %20 : vector<1x128xf32> to vector<16x128xf32>
    %22 = arith.addf %19, %21 : vector<16x128xf32>
    %cst_17 = arith.constant 0.000000e+00 : f32
    %23 = vector.broadcast %cst_17 : f32 to vector<16x128xf32>
    %24 = arith.maximumf %22, %23 : vector<16x128xf32>
    %25 = arith.truncf %24 : vector<16x128xf32> to vector<16x128xbf16>
    %c0_18 = arith.constant 0 : index
    %c0_19 = arith.constant 0 : index
    %26 = vector.load %arg8[%c0_18, %c0_19] : memref<128x128xbf16, #tpu.memory_space<vmem>>, vector<128x128xbf16>
    %cst_20 = arith.constant dense<0.000000e+00> : vector<16x128xf32>
    %27 = tpu.matmul %25, %26, %cst_20 {dimension_numbers = #tpu.dot_dimension_numbers<[1], [0], [0], [1], [0, 0, 1, 1], [], []>} : vector<16x128xbf16>, vector<128x128xbf16>, vector<16x128xf32> -> vector<16x128xf32>
    %c0_21 = arith.constant 0 : index
    %c0_22 = arith.constant 0 : index
    %28 = vector.load %arg9[%c0_21, %c0_22] : memref<1x128xf32, #tpu.memory_space<vmem>>, vector<1x128xf32>
    %29 = vector.broadcast %28 : vector<1x128xf32> to vector<16x128xf32>
    %30 = arith.addf %27, %29 : vector<16x128xf32>
    %cst_23 = arith.constant dense<0xFF800000> : vector<16xf32>
    %31 = vector.multi_reduction <maximumf>, %30, %cst_23 [1] : vector<16x128xf32> to vector<16xf32>
    %32 = vector.shape_cast %31 : vector<16xf32> to vector<16x1xf32>
    %33 = vector.broadcast %32 : vector<16x1xf32> to vector<16x128xf32>
    %34 = arith.subf %30, %33 : vector<16x128xf32>
    %35 = math.exp %34 : vector<16x128xf32>
    %cst_24 = arith.constant dense<0.000000e+00> : vector<16xf32>
    %36 = vector.multi_reduction <add>, %35, %cst_24 [1] : vector<16x128xf32> to vector<16xf32>
    %37 = vector.shape_cast %36 : vector<16xf32> to vector<16x1xf32>
    %38 = vector.broadcast %37 : vector<16x1xf32> to vector<16x128xf32>
    %39 = arith.divf %35, %38 : vector<16x128xf32>
    %c0_25 = arith.constant 0 : index
    %c0_26 = arith.constant 0 : index
    %40 = vector.load %arg10[%c0_25, %c0_26] : memref<16x128xf32, #tpu.memory_space<vmem>>, vector<16x128xf32>
    tpu.vector_store %arg10[%c0_25, %c0_26], %39 {strides = array<i32>} : memref<16x128xf32, #tpu.memory_space<vmem>>, vector<16x128xf32>,
    return
  }
  func.func @transform_0(%arg0: i32) -> (i32, i32) {
    %c0_i32 = arith.constant 0 : i32
    %c0_i32_0 = arith.constant 0 : i32
    return %arg0, %c0_i32 : i32, i32
  }
  func.func @transform_1(%arg0: i32) -> (i32, i32) {
    %c0_i32 = arith.constant 0 : i32
    %c0_i32_0 = arith.constant 0 : i32
    %c0_i32_1 = arith.constant 0 : i32
    return %c0_i32, %c0_i32_0 : i32, i32
  }
  func.func @transform_2(%arg0: i32) -> (i32, i32) {
    %c0_i32 = arith.constant 0 : i32
    %c0_i32_0 = arith.constant 0 : i32
    %c0_i32_1 = arith.constant 0 : i32
    return %c0_i32, %c0_i32_0 : i32, i32
  }
  func.func @transform_3(%arg0: i32) -> (i32, i32) {
    %c0_i32 = arith.constant 0 : i32
    %c0_i32_0 = arith.constant 0 : i32
    %c0_i32_1 = arith.constant 0 : i32
    return %c0_i32, %c0_i32_0 : i32, i32
  }
  func.func @transform_4(%arg0: i32) -> (i32, i32) {
    %c0_i32 = arith.constant 0 : i32
    %c0_i32_0 = arith.constant 0 : i32
    %c0_i32_1 = arith.constant 0 : i32
    return %c0_i32, %c0_i32_0 : i32, i32
  }
  func.func @transform_5(%arg0: i32) -> (i32, i32) {
    %c0_i32 = arith.constant 0 : i32
    %c0_i32_0 = arith.constant 0 : i32
    %c0_i32_1 = arith.constant 0 : i32
    return %c0_i32, %c0_i32_0 : i32, i32
  }
  func.func @transform_6(%arg0: i32) -> (i32, i32) {
    %c0_i32 = arith.constant 0 : i32
    %c0_i32_0 = arith.constant 0 : i32
    %c0_i32_1 = arith.constant 0 : i32
    return %c0_i32, %c0_i32_0 : i32, i32
  }
  func.func @transform_7(%arg0: i32) -> (i32, i32) {
    %c0_i32 = arith.constant 0 : i32
    %c0_i32_0 = arith.constant 0 : i32
    %c0_i32_1 = arith.constant 0 : i32
    return %c0_i32, %c0_i32_0 : i32, i32
  }
  func.func @transform_8(%arg0: i32) -> (i32, i32) {
    %c0_i32 = arith.constant 0 : i32
    %c0_i32_0 = arith.constant 0 : i32
    %c0_i32_1 = arith.constant 0 : i32
    return %c0_i32, %c0_i32_0 : i32, i32
  }
  func.func @transform_9(%arg0: i32) -> (i32, i32) {
    %c0_i32 = arith.constant 0 : i32
    %c0_i32_0 = arith.constant 0 : i32
    return %arg0, %c0_i32 : i32, i32
  }
}

</mosaic_0001>

<llo_original>
// kernel: tpu_custom_call.1
$region0: #{tpu_custom_call.1}
  #allocation0 [shape = 'u32[]', space=smem, size = 0x4, offset = 0x4, fixed_abs, tag = 'smem constant byte address 0x4 - core index']
  #allocation1 [shape = 'u32[144,128]{1,0:T(1,128)}', space=vmem, size = 0x12000, scoped, tag = 'internal scratch']
  %s0 = inlined_call_operand.hbm [shape: f32[16,128], index: 0, kind: input, shape index: {}]
  %s1 = inlined_call_operand.hbm [shape: bf16[128,128], index: 1, kind: input, shape index: {}]
  %s2 = inlined_call_operand.vmem [shape: f32[1,128], index: 2, kind: input, shape index: {}]
  %s3 = inlined_call_operand.hbm [shape: bf16[128,128], index: 3, kind: input, shape index: {}]
  %s4 = inlined_call_operand.vmem [shape: f32[1,128], index: 4, kind: input, shape index: {}]
  %s5 = inlined_call_operand.hbm [shape: bf16[128,128], index: 5, kind: input, shape index: {}]
  %s6 = inlined_call_operand.vmem [shape: f32[1,128], index: 6, kind: input, shape index: {}]
  %s7 = inlined_call_operand.hbm [shape: bf16[128,128], index: 7, kind: input, shape index: {}]
  %s8 = inlined_call_operand.vmem [shape: f32[1,128], index: 8, kind: input, shape index: {}]
  %s9 = inlined_call_operand.hbm [shape: f32[16,128], index: 9, kind: output, shape index: {}]
  %s10 = sld [smem:[#allocation0]]
  $region66: #{tpu_custom_call.1} parent=0
    _
  %s12 = ssub.s32 1, %s10
  %s13 = scalar_select 0, %s12, %s10
  $region1: #{tpu_custom_call.1} parent=0
    #allocation2 [shape = 'u8[8192]{0}', space=vmem, size = 0x2000, scoped, tag = 'input window, operand 0, single buffered']
    #allocation3 [shape = 's32[1]{0}', space=sflag, size = 0x4, scoped, tag = 'scoped memory for tpu_custom_call.1']
    #allocation4 [shape = 's32[1]{0}', space=sflag, size = 0x4, scoped, tag = 'scoped memory for tpu_custom_call.1']
    #allocation5 [shape = 'u8[32768]{0}', space=vmem, size = 0x8000, scoped, tag = 'input window, operand 1, single buffered']
    #allocation6 [shape = 's32[1]{0}', space=sflag, size = 0x4, scoped, tag = 'scoped memory for tpu_custom_call.1']
    #allocation7 [shape = 'u8[32768]{0}', space=vmem, size = 0x8000, scoped, tag = 'input window, operand 3, single buffered']
    #allocation8 [shape = 'u8[32768]{0}', space=vmem, size = 0x8000, scoped, tag = 'input window, operand 5, single buffered']
    #allocation9 [shape = 's32[1]{0}', space=sflag, size = 0x4, scoped, tag = 'scoped memory for tpu_custom_call.1']
    #allocation10 [shape = 'u8[32768]{0}', space=vmem, size = 0x8000, scoped, tag = 'input window, operand 7, single buffered']
    #allocation11 [shape = 'u8[8192]{0}', space=vmem, size = 0x2000, scoped, tag = 'output window, operand 0, single buffered']
    %14 = vsyncpa [#allocation3], 0
    %15 = vsyncpa [#allocation6], 0
    %16 = vsyncpa [#allocation9], 0
    %17 = vsyncpa [#allocation4], 0
    // Predicated region
    $region2: #{tpu_custom_call.1} parent=1 // pred_check
      _
    $region3: #{tpu_custom_call.1} parent=1 // pred_check_branch
      %19 = sbr.rel (0) target = $region5
    $region4: #{tpu_custom_call.1} parent=1 // pred_region
      %s21 = ssub.s32 256, 256
      %22 = vsyncadd [#allocation3], %s21
      %s23 = sshll.u32 [#allocation2], 4
      %s24 = int_to_ptr.vmem [resolvable:$true] %s23
      %29 = dma.hbm_to_vmem [thread:$0]  %s0, 256, %s24, [#allocation3], 128, 128, 8
    $region5: #{tpu_custom_call.1} parent=1 // pred_fallthru
      _
    // Predicated region
    $region6: #{tpu_custom_call.1} parent=1 // pred_check
      _
    $region7: #{tpu_custom_call.1} parent=1 // pred_check_branch
      %31 = sbr.rel (0) target = $region9
    $region8: #{tpu_custom_call.1} parent=1 // pred_region
      %s33 = ssub.s32 1024, 1024
      %34 = vsyncadd [#allocation6], %s33
      %s35 = sshll.u32 [#allocation5], 4
      %s36 = int_to_ptr.vmem [resolvable:$true] %s35
      %41 = dma.hbm_to_vmem [thread:$0]  %s1, 1024, %s36, [#allocation6], 64, 64, 4
    $region9: #{tpu_custom_call.1} parent=1 // pred_fallthru
      _
    // Predicated region
    $region10: #{tpu_custom_call.1} parent=1 // pred_check
      _
    $region11: #{tpu_custom_call.1} parent=1 // pred_check_branch
      %43 = sbr.rel (0) target = $region13
    $region12: #{tpu_custom_call.1} parent=1 // pred_region
      _
    $region13: #{tpu_custom_call.1} parent=1 // pred_fallthru
      _
    // Predicated region
    $region14: #{tpu_custom_call.1} parent=1 // pred_check
      _
    $region15: #{tpu_custom_call.1} parent=1 // pred_check_branch
      %45 = sbr.rel (0) target = $region17
    $region16: #{tpu_custom_call.1} parent=1 // pred_region
      %s47 = ssub.s32 1024, 1024
      %48 = vsyncadd [#allocation6], %s47
      %s49 = sshll.u32 [#allocation7], 4
      %s50 = int_to_ptr.vmem [resolvable:$true] %s49
      %55 = dma.hbm_to_vmem [thread:$0]  %s3, 1024, %s50, [#allocation6], 64, 64, 4
    $region17: #{tpu_custom_call.1} parent=1 // pred_fallthru
      _
    // Predicated region
    $region18: #{tpu_custom_call.1} parent=1 // pred_check
      _
    $region19: #{tpu_custom_call.1} parent=1 // pred_check_branch
      %57 = sbr.rel (0) target = $region21
    $region20: #{tpu_custom_call.1} parent=1 // pred_region
      _
    $region21: #{tpu_custom_call.1} parent=1 // pred_fallthru
      _
    // Predicated region
    $region22: #{tpu_custom_call.1} parent=1 // pred_check
      _
    $region23: #{tpu_custom_call.1} parent=1 // pred_check_branch
      %59 = sbr.rel (0) target = $region25
    $region24: #{tpu_custom_call.1} parent=1 // pred_region
      %s61 = ssub.s32 1024, 1024
      %62 = vsyncadd [#allocation9], %s61
      %s63 = sshll.u32 [#allocation8], 4
      %s64 = int_to_ptr.vmem [resolvable:$true] %s63
      %69 = dma.hbm_to_vmem [thread:$0]  %s5, 1024, %s64, [#allocation9], 64, 64, 4
    $region25: #{tpu_custom_call.1} parent=1 // pred_fallthru
      _
    // Predicated region
    $region26: #{tpu_custom_call.1} parent=1 // pred_check
      _
    $region27: #{tpu_custom_call.1} parent=1 // pred_check_branch
      %71 = sbr.rel (0) target = $region29
    $region28: #{tpu_custom_call.1} parent=1 // pred_region
      _
    $region29: #{tpu_custom_call.1} parent=1 // pred_fallthru
      _
    // Predicated region
    $region30: #{tpu_custom_call.1} parent=1 // pred_check
      _
    $region31: #{tpu_custom_call.1} parent=1 // pred_check_branch
      %73 = sbr.rel (0) target = $region33
    $region32: #{tpu_custom_call.1} parent=1 // pred_region
      %s75 = ssub.s32 1024, 1024
      %76 = vsyncadd [#allocation9], %s75
      %s77 = sshll.u32 [#allocation10], 4
      %s78 = int_to_ptr.vmem [resolvable:$true] %s77
      %83 = dma.hbm_to_vmem [thread:$0]  %s7, 1024, %s78, [#allocation9], 64, 64, 4
    $region33: #{tpu_custom_call.1} parent=1 // pred_fallthru
      _
    // Predicated region
    $region34: #{tpu_custom_call.1} parent=1 // pred_check
      _
    $region35: #{tpu_custom_call.1} parent=1 // pred_check_branch
      %85 = sbr.rel (0) target = $region37
    $region36: #{tpu_custom_call.1} parent=1 // pred_region
      _
    $region37: #{tpu_custom_call.1} parent=1 // pred_fallthru
      _
    // Predicated region
    $region38: #{tpu_custom_call.1} parent=1 // pred_check
      _
    $region39: #{tpu_custom_call.1} parent=1 // pred_check_branch
      %87 = sbr.rel (0) target = $region41
    $region40: #{tpu_custom_call.1} parent=1 // pred_region
      %88 = dma.done [#allocation3], 256
    $region41: #{tpu_custom_call.1} parent=1 // pred_fallthru
      _
    // Predicated region
    $region42: #{tpu_custom_call.1} parent=1 // pred_check
      _
    $region43: #{tpu_custom_call.1} parent=1 // pred_check_branch
      %90 = sbr.rel (0) target = $region45
    $region44: #{tpu_custom_call.1} parent=1 // pred_region
      %91 = dma.done [#allocation6], 1024
    $region45: #{tpu_custom_call.1} parent=1 // pred_fallthru
      _
    // Predicated region
    $region46: #{tpu_custom_call.1} parent=1 // pred_check
      _
    $region47: #{tpu_custom_call.1} parent=1 // pred_check_branch
      %93 = sbr.rel (0) target = $region49
    $region48: #{tpu_custom_call.1} parent=1 // pred_region
      %94 = dma.done [#allocation6], 1024
    $region49: #{tpu_custom_call.1} parent=1 // pred_fallthru
      _
    // Predicated region
    $region50: #{tpu_custom_call.1} parent=1 // pred_check
      _
    $region51: #{tpu_custom_call.1} parent=1 // pred_check_branch
      %96 = sbr.rel (0) target = $region53
    $region52: #{tpu_custom_call.1} parent=1 // pred_region
      %97 = dma.done [#allocation9], 1024
    $region53: #{tpu_custom_call.1} parent=1 // pred_fallthru
      _
    // Predicated region
    $region54: #{tpu_custom_call.1} parent=1 // pred_check
      _
    $region55: #{tpu_custom_call.1} parent=1 // pred_check_branch
      %99 = sbr.rel (0) target = $region57
    $region56: #{tpu_custom_call.1} parent=1 // pred_region
      %100 = dma.done [#allocation9], 1024
    $region57: #{tpu_custom_call.1} parent=1 // pred_fallthru
      _
    %v102 = vld [vmem:[#allocation2] sm:$0xff]
    %v103 = vld [vmem:[#allocation2 + $0x8] sm:$0xff]
    %v104 = vpack.c.bf16 %v103, %v102
    %v105 = vld [vmem:[#allocation5] sm:$0xf]
    %v106 = vld [vmem:[#allocation5 + $0x4] sm:$0xf]
    %v107 = vld [vmem:[#allocation5 + $0x8] sm:$0xf]
    %v108 = vld [vmem:[#allocation5 + $0xc] sm:$0xf]
    %v109 = vld [vmem:[#allocation5 + $0x10] sm:$0xf]
    %v110 = vld [vmem:[#allocation5 + $0x14] sm:$0xf]
    %v111 = vld [vmem:[#allocation5 + $0x18] sm:$0xf]
    %v112 = vld [vmem:[#allocation5 + $0x1c] sm:$0xf]
    %v113 = vld [vmem:[#allocation5 + $0x20] sm:$0xf]
    %v114 = vld [vmem:[#allocation5 + $0x24] sm:$0xf]
    %v115 = vld [vmem:[#allocation5 + $0x28] sm:$0xf]
    %v116 = vld [vmem:[#allocation5 + $0x2c] sm:$0xf]
    %v117 = vld [vmem:[#allocation5 + $0x30] sm:$0xf]
    %v118 = vld [vmem:[#allocation5 + $0x34] sm:$0xf]
    %v119 = vld [vmem:[#allocation5 + $0x38] sm:$0xf]
    %v120 = vld [vmem:[#allocation5 + $0x3c] sm:$0xf]
    %v121 = vld [vmem:[%s2] sm:$0x1]
    %v123 = vlaneseq
    %v124 = vshrl.u32 %v123, 7
    %v125 = vsub.s32 0, %v124
    %v126 = vrot.slane %v121, %v125
    %v144 = vunpack.c.l.b16 %v105
    %v145 = vunpack.c.l.b16 %v106
    %v146 = vunpack.c.l.b16 %v107
    %v147 = vunpack.c.l.b16 %v108
    %v148 = vunpack.c.l.b16 %v109
    %v149 = vunpack.c.l.b16 %v110
    %v150 = vunpack.c.l.b16 %v111
    %v151 = vunpack.c.l.b16 %v112
    %v152 = vunpack.c.l.b16 %v113
    %v153 = vunpack.c.l.b16 %v114
    %v154 = vunpack.c.l.b16 %v115
    %v155 = vunpack.c.l.b16 %v116
    %v156 = vunpack.c.l.b16 %v117
    %v157 = vunpack.c.l.b16 %v118
    %v158 = vunpack.c.l.b16 %v119
    %v159 = vunpack.c.l.b16 %v120
    %v160 = vpack.c.b16 %v145, %v144
    %v161 = vpack.c.b16 %v147, %v146
    %v162 = vpack.c.b16 %v149, %v148
    %v163 = vpack.c.b16 %v151, %v150
    %v164 = vpack.c.b16 %v153, %v152
    %v165 = vpack.c.b16 %v155, %v154
    %v166 = vpack.c.b16 %v157, %v156
    %v167 = vpack.c.b16 %v159, %v158
    %176 = vmatprep.subr.bf16.mxu0 0
    %177 = vmatpush1.bf16.msra.mxu0 %v160
    %178 = vmatprep.subr.bf16.mxu0 0
    %179 = vmatpush1.bf16.msra.mxu0 %v161
    %180 = vmatprep.subr.bf16.mxu0 0
    %181 = vmatpush1.bf16.msra.mxu0 %v162
    %182 = vmatprep.subr.bf16.mxu0 0
    %183 = vmatpush1.bf16.msra.mxu0 %v163
    %184 = vmatprep.subr.bf16.mxu0 0
    %185 = vmatpush1.bf16.msra.mxu0 %v164
    %186 = vmatprep.subr.bf16.mxu0 0
    %187 = vmatpush1.bf16.msra.mxu0 %v165
    %188 = vmatprep.subr.bf16.mxu0 0
    %189 = vmatpush1.bf16.msra.mxu0 %v166
    %190 = vmatprep.subr.bf16.mxu0 0
    %191 = vmatpush1.bf16.msra.mxu0 %v167
    %192 = vmatprep.subr.bf16.mxu0 0
    %193 = vmatpush1.bf16.msra.mxu0 0
    %194 = vmatprep.subr.bf16.mxu0 0
    %195 = vmatpush1.bf16.msra.mxu0 0
    %196 = vmatprep.subr.bf16.mxu0 0
    %197 = vmatpush1.bf16.msra.mxu0 0
    %198 = vmatprep.subr.bf16.mxu0 0
    %199 = vmatpush1.bf16.msra.mxu0 0
    %200 = vmatprep.subr.bf16.mxu0 0
    %201 = vmatpush1.bf16.msra.mxu0 0
    %202 = vmatprep.subr.bf16.mxu0 0
    %203 = vmatpush1.bf16.msra.mxu0 0
    %204 = vmatprep.subr.bf16.mxu0 0
    %205 = vmatpush1.bf16.msra.mxu0 0
    %206 = vmatprep.subr.bf16.mxu0 0
    %207 = vmatpush1.bf16.msra.mxu0 0
    %208 = vmatprep.mubr.bf16.mxu0 0
    %209 = vmatmul.mubr.bf16.gmra.mrb[0].mxu0 %v104
    %v210 = vpop.f32.mrb[0].mxu0
    %v211 = vadd.f32 %v126, %v210
    %v212 = vpop.f32.mrb[0].mxu0
    %v213 = vpop.f32.mrb[0].mxu0
    %v214 = vadd.f32 %v126, %v213
    %v215 = vpop.f32.mrb[0].mxu0
    %216 = vdwg.mxu0
    %v217 = vmax.f32 %v211, 0.0
    %v218 = vmax.f32 %v214, 0.0
    %v219 = vpack.c.bf16 %v218, %v217
    %v220 = vld [vmem:[#allocation7] sm:$0xf]
    %v221 = vld [vmem:[#allocation7 + $0x4] sm:$0xf]
    %v222 = vld [vmem:[#allocation7 + $0x8] sm:$0xf]
    %v223 = vld [vmem:[#allocation7 + $0xc] sm:$0xf]
    %v224 = vld [vmem:[#allocation7 + $0x10] sm:$0xf]
    %v225 = vld [vmem:[#allocation7 + $0x14] sm:$0xf]
    %v226 = vld [vmem:[#allocation7 + $0x18] sm:$0xf]
    %v227 = vld [vmem:[#allocation7 + $0x1c] sm:$0xf]
    %v228 = vld [vmem:[#allocation7 + $0x20] sm:$0xf]
    %v229 = vld [vmem:[#allocation7 + $0x24] sm:$0xf]
    %v230 = vld [vmem:[#allocation7 + $0x28] sm:$0xf]
    %v231 = vld [vmem:[#allocation7 + $0x2c] sm:$0xf]
    %v232 = vld [vmem:[#allocation7 + $0x30] sm:$0xf]
    %v233 = vld [vmem:[#allocation7 + $0x34] sm:$0xf]
    %v234 = vld [vmem:[#allocation7 + $0x38] sm:$0xf]
    %v235 = vld [vmem:[#allocation7 + $0x3c] sm:$0xf]
    %v236 = vld [vmem:[%s4] sm:$0x1]
    %v238 = vlaneseq
    %v239 = vshrl.u32 %v238, 7
    %v240 = vsub.s32 0, %v239
    %v241 = vrot.slane %v236, %v240
    %v259 = vunpack.c.l.b16 %v220
    %v260 = vunpack.c.l.b16 %v221
    %v261 = vunpack.c.l.b16 %v222
    %v262 = vunpack.c.l.b16 %v223
    %v263 = vunpack.c.l.b16 %v224
    %v264 = vunpack.c.l.b16 %v225
    %v265 = vunpack.c.l.b16 %v226
    %v266 = vunpack.c.l.b16 %v227
    %v267 = vunpack.c.l.b16 %v228
    %v268 = vunpack.c.l.b16 %v229
    %v269 = vunpack.c.l.b16 %v230
    %v270 = vunpack.c.l.b16 %v231
    %v271 = vunpack.c.l.b16 %v232
    %v272 = vunpack.c.l.b16 %v233
    %v273 = vunpack.c.l.b16 %v234
    %v274 = vunpack.c.l.b16 %v235
    %v275 = vpack.c.b16 %v260, %v259
    %v276 = vpack.c.b16 %v262, %v261
    %v277 = vpack.c.b16 %v264, %v263
    %v278 = vpack.c.b16 %v266, %v265
    %v279 = vpack.c.b16 %v268, %v267
    %v280 = vpack.c.b16 %v270, %v269
    %v281 = vpack.c.b16 %v272, %v271
    %v282 = vpack.c.b16 %v274, %v273
    %291 = vmatprep.subr.bf16.mxu0 0
    %292 = vmatpush1.bf16.msra.mxu0 %v275
    %293 = vmatprep.subr.bf16.mxu0 0
    %294 = vmatpush1.bf16.msra.mxu0 %v276
    %295 = vmatprep.subr.bf16.mxu0 0
    %296 = vmatpush1.bf16.msra.mxu0 %v277
    %297 = vmatprep.subr.bf16.mxu0 0
    %298 = vmatpush1.bf16.msra.mxu0 %v278
    %299 = vmatprep.subr.bf16.mxu0 0
    %300 = vmatpush1.bf16.msra.mxu0 %v279
    %301 = vmatprep.subr.bf16.mxu0 0
    %302 = vmatpush1.bf16.msra.mxu0 %v280
    %303 = vmatprep.subr.bf16.mxu0 0
    %304 = vmatpush1.bf16.msra.mxu0 %v281
    %305 = vmatprep.subr.bf16.mxu0 0
    %306 = vmatpush1.bf16.msra.mxu0 %v282
    %307 = vmatprep.subr.bf16.mxu0 0
    %308 = vmatpush1.bf16.msra.mxu0 0
    %309 = vmatprep.subr.bf16.mxu0 0
    %310 = vmatpush1.bf16.msra.mxu0 0
    %311 = vmatprep.subr.bf16.mxu0 0
    %312 = vmatpush1.bf16.msra.mxu0 0
    %313 = vmatprep.subr.bf16.mxu0 0
    %314 = vmatpush1.bf16.msra.mxu0 0
    %315 = vmatprep.subr.bf16.mxu0 0
    %316 = vmatpush1.bf16.msra.mxu0 0
    %317 = vmatprep.subr.bf16.mxu0 0
    %318 = vmatpush1.bf16.msra.mxu0 0
    %319 = vmatprep.subr.bf16.mxu0 0
    %320 = vmatpush1.bf16.msra.mxu0 0
    %321 = vmatprep.subr.bf16.mxu0 0
    %322 = vmatpush1.bf16.msra.mxu0 0
    %323 = vmatprep.mubr.bf16.mxu0 0
    %324 = vmatmul.mubr.bf16.gmra.mrb[0].mxu0 %v219
    %v325 = vpop.f32.mrb[0].mxu0
    %v326 = vadd.f32 %v241, %v325
    %v327 = vpop.f32.mrb[0].mxu0
    %v328 = vpop.f32.mrb[0].mxu0
    %v329 = vadd.f32 %v241, %v328
    %v330 = vpop.f32.mrb[0].mxu0
    %331 = vdwg.mxu0
    %v332 = vmax.f32 %v326, 0.0
    %v333 = vmax.f32 %v329, 0.0
    %v334 = vpack.c.bf16 %v333, %v332
    %v335 = vld [vmem:[#allocation8] sm:$0xf]
    %v336 = vld [vmem:[#allocation8 + $0x4] sm:$0xf]
    %v337 = vld [vmem:[#allocation8 + $0x8] sm:$0xf]
    %v338 = vld [vmem:[#allocation8 + $0xc] sm:$0xf]
    %v339 = vld [vmem:[#allocation8 + $0x10] sm:$0xf]
    %v340 = vld [vmem:[#allocation8 + $0x14] sm:$0xf]
    %v341 = vld [vmem:[#allocation8 + $0x18] sm:$0xf]
    %v342 = vld [vmem:[#allocation8 + $0x1c] sm:$0xf]
    %v343 = vld [vmem:[#allocation8 + $0x20] sm:$0xf]
    %v344 = vld [vmem:[#allocation8 + $0x24] sm:$0xf]
    %v345 = vld [vmem:[#allocation8 + $0x28] sm:$0xf]
    %v346 = vld [vmem:[#allocation8 + $0x2c] sm:$0xf]
    %v347 = vld [vmem:[#allocation8 + $0x30] sm:$0xf]
    %v348 = vld [vmem:[#allocation8 + $0x34] sm:$0xf]
    %v349 = vld [vmem:[#allocation8 + $0x38] sm:$0xf]
    %v350 = vld [vmem:[#allocation8 + $0x3c] sm:$0xf]
    %v351 = vld [vmem:[%s6] sm:$0x1]
    %v353 = vlaneseq
    %v354 = vshrl.u32 %v353, 7
    %v355 = vsub.s32 0, %v354
    %v356 = vrot.slane %v351, %v355
    %v374 = vunpack.c.l.b16 %v335
    %v375 = vunpack.c.l.b16 %v336
    %v376 = vunpack.c.l.b16 %v337
    %v377 = vunpack.c.l.b16 %v338
    %v378 = vunpack.c.l.b16 %v339
    %v379 = vunpack.c.l.b16 %v340
    %v380 = vunpack.c.l.b16 %v341
    %v381 = vunpack.c.l.b16 %v342
    %v382 = vunpack.c.l.b16 %v343
    %v383 = vunpack.c.l.b16 %v344
    %v384 = vunpack.c.l.b16 %v345
    %v385 = vunpack.c.l.b16 %v346
    %v386 = vunpack.c.l.b16 %v347
    %v387 = vunpack.c.l.b16 %v348
    %v388 = vunpack.c.l.b16 %v349
    %v389 = vunpack.c.l.b16 %v350
    %v390 = vpack.c.b16 %v375, %v374
    %v391 = vpack.c.b16 %v377, %v376
    %v392 = vpack.c.b16 %v379, %v378
    %v393 = vpack.c.b16 %v381, %v380
    %v394 = vpack.c.b16 %v383, %v382
    %v395 = vpack.c.b16 %v385, %v384
    %v396 = vpack.c.b16 %v387, %v386
    %v397 = vpack.c.b16 %v389, %v388
    %406 = vmatprep.subr.bf16.mxu0 0
    %407 = vmatpush1.bf16.msra.mxu0 %v390
    %408 = vmatprep.subr.bf16.mxu0 0
    %409 = vmatpush1.bf16.msra.mxu0 %v391
    %410 = vmatprep.subr.bf16.mxu0 0
    %411 = vmatpush1.bf16.msra.mxu0 %v392
    %412 = vmatprep.subr.bf16.mxu0 0
    %413 = vmatpush1.bf16.msra.mxu0 %v393
    %414 = vmatprep.subr.bf16.mxu0 0
    %415 = vmatpush1.bf16.msra.mxu0 %v394
    %416 = vmatprep.subr.bf16.mxu0 0
    %417 = vmatpush1.bf16.msra.mxu0 %v395
    %418 = vmatprep.subr.bf16.mxu0 0
    %419 = vmatpush1.bf16.msra.mxu0 %v396
    %420 = vmatprep.subr.bf16.mxu0 0
    %421 = vmatpush1.bf16.msra.mxu0 %v397
    %422 = vmatprep.subr.bf16.mxu0 0
    %423 = vmatpush1.bf16.msra.mxu0 0
    %424 = vmatprep.subr.bf16.mxu0 0
    %425 = vmatpush1.bf16.msra.mxu0 0
    %426 = vmatprep.subr.bf16.mxu0 0
    %427 = vmatpush1.bf16.msra.mxu0 0
    %428 = vmatprep.subr.bf16.mxu0 0
    %429 = vmatpush1.bf16.msra.mxu0 0
    %430 = vmatprep.subr.bf16.mxu0 0
    %431 = vmatpush1.bf16.msra.mxu0 0
    %432 = vmatprep.subr.bf16.mxu0 0
    %433 = vmatpush1.bf16.msra.mxu0 0
    %434 = vmatprep.subr.bf16.mxu0 0
    %435 = vmatpush1.bf16.msra.mxu0 0
    %436 = vmatprep.subr.bf16.mxu0 0
    %437 = vmatpush1.bf16.msra.mxu0 0
    %438 = vmatprep.mubr.bf16.mxu0 0
    %439 = vmatmul.mubr.bf16.gmra.mrb[0].mxu0 %v334
    %v440 = vpop.f32.mrb[0].mxu0
    %v441 = vadd.f32 %v356, %v440
    %v442 = vpop.f32.mrb[0].mxu0
    %v443 = vpop.f32.mrb[0].mxu0
    %v444 = vadd.f32 %v356, %v443
    %v445 = vpop.f32.mrb[0].mxu0
    %446 = vdwg.mxu0
    %v447 = vmax.f32 %v441, 0.0
    %v448 = vmax.f32 %v444, 0.0
    %v449 = vpack.c.bf16 %v448, %v447
    %v450 = vld [vmem:[#allocation10] sm:$0xf]
    %v451 = vld [vmem:[#allocation10 + $0x4] sm:$0xf]
    %v452 = vld [vmem:[#allocation10 + $0x8] sm:$0xf]
    %v453 = vld [vmem:[#allocation10 + $0xc] sm:$0xf]
    %v454 = vld [vmem:[#allocation10 + $0x10] sm:$0xf]
    %v455 = vld [vmem:[#allocation10 + $0x14] sm:$0xf]
    %v456 = vld [vmem:[#allocation10 + $0x18] sm:$0xf]
    %v457 = vld [vmem:[#allocation10 + $0x1c] sm:$0xf]
    %v458 = vld [vmem:[#allocation10 + $0x20] sm:$0xf]
    %v459 = vld [vmem:[#allocation10 + $0x24] sm:$0xf]
    %v460 = vld [vmem:[#allocation10 + $0x28] sm:$0xf]
    %v461 = vld [vmem:[#allocation10 + $0x2c] sm:$0xf]
    %v462 = vld [vmem:[#allocation10 + $0x30] sm:$0xf]
    %v463 = vld [vmem:[#allocation10 + $0x34] sm:$0xf]
    %v464 = vld [vmem:[#allocation10 + $0x38] sm:$0xf]
    %v465 = vld [vmem:[#allocation10 + $0x3c] sm:$0xf]
    %v466 = vld [vmem:[%s8] sm:$0x1]
    %v468 = vlaneseq
    %v469 = vshrl.u32 %v468, 7
    %v470 = vsub.s32 0, %v469
    %v471 = vrot.slane %v466, %v470
    %v489 = vunpack.c.l.b16 %v450
    %v490 = vunpack.c.l.b16 %v451
    %v491 = vunpack.c.l.b16 %v452
    %v492 = vunpack.c.l.b16 %v453
    %v493 = vunpack.c.l.b16 %v454
    %v494 = vunpack.c.l.b16 %v455
    %v495 = vunpack.c.l.b16 %v456
    %v496 = vunpack.c.l.b16 %v457
    %v497 = vunpack.c.l.b16 %v458
    %v498 = vunpack.c.l.b16 %v459
    %v499 = vunpack.c.l.b16 %v460
    %v500 = vunpack.c.l.b16 %v461
    %v501 = vunpack.c.l.b16 %v462
    %v502 = vunpack.c.l.b16 %v463
    %v503 = vunpack.c.l.b16 %v464
    %v504 = vunpack.c.l.b16 %v465
    %v505 = vpack.c.b16 %v490, %v489
    %v506 = vpack.c.b16 %v492, %v491
    %v507 = vpack.c.b16 %v494, %v493
    %v508 = vpack.c.b16 %v496, %v495
    %v509 = vpack.c.b16 %v498, %v497
    %v510 = vpack.c.b16 %v500, %v499
    %v511 = vpack.c.b16 %v502, %v501
    %v512 = vpack.c.b16 %v504, %v503
    %521 = vmatprep.subr.bf16.mxu0 0
    %522 = vmatpush1.bf16.msra.mxu0 %v505
    %523 = vmatprep.subr.bf16.mxu0 0
    %524 = vmatpush1.bf16.msra.mxu0 %v506
    %525 = vmatprep.subr.bf16.mxu0 0
    %526 = vmatpush1.bf16.msra.mxu0 %v507
    %527 = vmatprep.subr.bf16.mxu0 0
    %528 = vmatpush1.bf16.msra.mxu0 %v508
    %529 = vmatprep.subr.bf16.mxu0 0
    %530 = vmatpush1.bf16.msra.mxu0 %v509
    %531 = vmatprep.subr.bf16.mxu0 0
    %532 = vmatpush1.bf16.msra.mxu0 %v510
    %533 = vmatprep.subr.bf16.mxu0 0
    %534 = vmatpush1.bf16.msra.mxu0 %v511
    %535 = vmatprep.subr.bf16.mxu0 0
    %536 = vmatpush1.bf16.msra.mxu0 %v512
    %537 = vmatprep.subr.bf16.mxu0 0
    %538 = vmatpush1.bf16.msra.mxu0 0
    %539 = vmatprep.subr.bf16.mxu0 0
    %540 = vmatpush1.bf16.msra.mxu0 0
    %541 = vmatprep.subr.bf16.mxu0 0
    %542 = vmatpush1.bf16.msra.mxu0 0
    %543 = vmatprep.subr.bf16.mxu0 0
    %544 = vmatpush1.bf16.msra.mxu0 0
    %545 = vmatprep.subr.bf16.mxu0 0
    %546 = vmatpush1.bf16.msra.mxu0 0
    %547 = vmatprep.subr.bf16.mxu0 0
    %548 = vmatpush1.bf16.msra.mxu0 0
    %549 = vmatprep.subr.bf16.mxu0 0
    %550 = vmatpush1.bf16.msra.mxu0 0
    %551 = vmatprep.subr.bf16.mxu0 0
    %552 = vmatpush1.bf16.msra.mxu0 0
    %553 = vmatprep.mubr.bf16.mxu0 0
    %554 = vmatmul.mubr.bf16.gmra.mrb[0].mxu0 %v449
    %v555 = vpop.f32.mrb[0].mxu0
    %v556 = vadd.f32 %v471, %v555
    %v557 = vpop.f32.mrb[0].mxu0
    %v558 = vpop.f32.mrb[0].mxu0
    %v559 = vadd.f32 %v471, %v558
    %v560 = vpop.f32.mrb[0].mxu0
    %561 = vdwg.mxu0
    %562 = vmax.xlane.f32.xlu0 %v556
    %v563 = vpop.xlane.xlu0 %562
    %564 = vmax.xlane.f32.xlu0 %v559
    %v565 = vpop.xlane.xlu0 %564
    %v566 = vsub.f32 %v556, %v563
    %v567 = vsub.f32 %v559, %v565
    %v568 = vmul.f32 %v566, 1.442695
    %v569 = vpow.pop %v568
    %v570 = vmul.f32 %v567, 1.442695
    %v571 = vpow.pop %v570
    %572 = vadd.xlane.f32.xlu0 %v569
    %v573 = vpop.xlane.xlu0 %572
    %574 = vadd.xlane.f32.xlu0 %v571
    %v575 = vpop.xlane.xlu0 %574
    %v576 = vrcp.pop %v573
    %v577 = vmul.f32 %v569, %v576
    %v578 = vrcp.pop %v575
    %v579 = vmul.f32 %v571, %v578
    %580 = vst [vmem:[#allocation11] sm:$0xff] %v577
    %581 = vst [vmem:[#allocation11 + $0x8] sm:$0xff] %v579
    // Predicated region
    $region58: #{tpu_custom_call.1} parent=1 // pred_check
      _
    $region59: #{tpu_custom_call.1} parent=1 // pred_check_branch
      %583 = sbr.rel (0) target = $region61
    $region60: #{tpu_custom_call.1} parent=1 // pred_region
      %s585 = ssub.s32 256, 256
      %586 = vsyncadd [#allocation4], %s585
      %s587 = sshll.u32 [#allocation11], 4
      %s588 = int_to_ptr.vmem [resolvable:$true] %s587
      %593 = dma.vmem_to_hbm [thread:$0]  %s588, 256, %s9, [#allocation4], 128, 128, 8
    $region61: #{tpu_custom_call.1} parent=1 // pred_fallthru
      _
    // Predicated region
    $region62: #{tpu_custom_call.1} parent=1 // pred_check
      _
    $region63: #{tpu_custom_call.1} parent=1 // pred_check_branch
      %595 = sbr.rel (0) target = $region65
    $region64: #{tpu_custom_call.1} parent=1 // pred_region
      %596 = dma.done [#allocation4], 256
    $region65: #{tpu_custom_call.1} parent=1 // pred_fallthru
      _
    %597 = vsyncpa [#allocation3], 1
    %598 = vsyncpa [#allocation6], 1
    %599 = vsyncpa [#allocation9], 1
    %600 = vsyncpa [#allocation4], 1

// kernel: tpu_custom_call.1
$region0: #{tpu_custom_call.1}
  #allocation0 [shape = 'u32[]', space=smem, size = 0x4, offset = 0x4, fixed_abs, tag = 'smem constant byte address 0x4 - core index']
  #allocation1 [shape = 'u32[144,128]{1,0:T(1,128)}', space=vmem, size = 0x12000, scoped, tag = 'internal scratch']
  %s0 = inlined_call_operand.hbm [shape: f32[16,128], index: 0, kind: input, shape index: {}]
  %s1 = inlined_call_operand.hbm [shape: bf16[128,128], index: 1, kind: input, shape index: {}]
  %s2 = inlined_call_operand.vmem [shape: f32[1,128], index: 2, kind: input, shape index: {}]
  %s3 = inlined_call_operand.hbm [shape: bf16[128,128], index: 3, kind: input, shape index: {}]
  %s4 = inlined_call_operand.vmem [shape: f32[1,128], index: 4, kind: input, shape index: {}]
  %s5 = inlined_call_operand.hbm [shape: bf16[128,128], index: 5, kind: input, shape index: {}]
  %s6 = inlined_call_operand.vmem [shape: f32[1,128], index: 6, kind: input, shape index: {}]
  %s7 = inlined_call_operand.hbm [shape: bf16[128,128], index: 7, kind: input, shape index: {}]
  %s8 = inlined_call_operand.vmem [shape: f32[1,128], index: 8, kind: input, shape index: {}]
  %s9 = inlined_call_operand.hbm [shape: f32[16,128], index: 9, kind: output, shape index: {}]
  %s10 = sld [smem:[#allocation0]]
  $region66: #{tpu_custom_call.1} parent=0
    _
  %s12 = ssub.s32 1, %s10
  %s13 = scalar_select 0, %s12, %s10
  $region1: #{tpu_custom_call.1} parent=0
    #allocation2 [shape = 'u8[8192]{0}', space=vmem, size = 0x2000, scoped, tag = 'input window, operand 0, single buffered']
    #allocation3 [shape = 's32[1]{0}', space=sflag, size = 0x4, scoped, tag = 'scoped memory for tpu_custom_call.1']
    #allocation4 [shape = 's32[1]{0}', space=sflag, size = 0x4, scoped, tag = 'scoped memory for tpu_custom_call.1']
    #allocation5 [shape = 'u8[32768]{0}', space=vmem, size = 0x8000, scoped, tag = 'input window, operand 1, single buffered']
    #allocation6 [shape = 's32[1]{0}', space=sflag, size = 0x4, scoped, tag = 'scoped memory for tpu_custom_call.1']
    #allocation7 [shape = 'u8[32768]{0}', space=vmem, size = 0x8000, scoped, tag = 'input window, operand 3, single buffered']
    #allocation8 [shape = 'u8[32768]{0}', space=vmem, size = 0x8000, scoped, tag = 'input window, operand 5, single buffered']
    #allocation9 [shape = 's32[1]{0}', space=sflag, size = 0x4, scoped, tag = 'scoped memory for tpu_custom_call.1']
    #allocation10 [shape = 'u8[32768]{0}', space=vmem, size = 0x8000, scoped, tag = 'input window, operand 7, single buffered']
    #allocation11 [shape = 'u8[8192]{0}', space=vmem, size = 0x2000, scoped, tag = 'output window, operand 0, single buffered']
    %14 = vsyncpa [#allocation3], 0
    %15 = vsyncpa [#allocation6], 0
    %16 = vsyncpa [#allocation9], 0
    %17 = vsyncpa [#allocation4], 0
    // Predicated region
    $region2: #{tpu_custom_call.1} parent=1 // pred_check
      _
    $region3: #{tpu_custom_call.1} parent=1 // pred_check_branch
      %19 = sbr.rel (0) target = $region5
    $region4: #{tpu_custom_call.1} parent=1 // pred_region
      %s21 = ssub.s32 256, 256
      %22 = vsyncadd [#allocation3], %s21
      %s23 = sshll.u32 [#allocation2], 4
      %s24 = int_to_ptr.vmem [resolvable:$true] %s23
      %29 = dma.hbm_to_vmem [thread:$0]  %s0, 256, %s24, [#allocation3], 128, 128, 8
    $region5: #{tpu_custom_call.1} parent=1 // pred_fallthru
      _
    // Predicated region
    $region6: #{tpu_custom_call.1} parent=1 // pred_check
      _
    $region7: #{tpu_custom_call.1} parent=1 // pred_check_branch
      %31 = sbr.rel (0) target = $region9
    $region8: #{tpu_custom_call.1} parent=1 // pred_region
      %s33 = ssub.s32 1024, 1024
      %34 = vsyncadd [#allocation6], %s33
      %s35 = sshll.u32 [#allocation5], 4
      %s36 = int_to_ptr.vmem [resolvable:$true] %s35
      %41 = dma.hbm_to_vmem [thread:$0]  %s1, 1024, %s36, [#allocation6], 64, 64, 4
    $region9: #{tpu_custom_call.1} parent=1 // pred_fallthru
      _
    // Predicated region
    $region10: #{tpu_custom_call.1} parent=1 // pred_check
      _
    $region11: #{tpu_custom_call.1} parent=1 // pred_check_branch
      %43 = sbr.rel (0) target = $region13
    $region12: #{tpu_custom_call.1} parent=1 // pred_region
      _
    $region13: #{tpu_custom_call.1} parent=1 // pred_fallthru
      _
    // Predicated region
    $region14: #{tpu_custom_call.1} parent=1 // pred_check
      _
    $region15: #{tpu_custom_call.1} parent=1 // pred_check_branch
      %45 = sbr.rel (0) target = $region17
    $region16: #{tpu_custom_call.1} parent=1 // pred_region
      %s47 = ssub.s32 1024, 1024
      %48 = vsyncadd [#allocation6], %s47
      %s49 = sshll.u32 [#allocation7], 4
      %s50 = int_to_ptr.vmem [resolvable:$true] %s49
      %55 = dma.hbm_to_vmem [thread:$0]  %s3, 1024, %s50, [#allocation6], 64, 64, 4
    $region17: #{tpu_custom_call.1} parent=1 // pred_fallthru
      _
    // Predicated region
    $region18: #{tpu_custom_call.1} parent=1 // pred_check
      _
    $region19: #{tpu_custom_call.1} parent=1 // pred_check_branch
      %57 = sbr.rel (0) target = $region21
    $region20: #{tpu_custom_call.1} parent=1 // pred_region
      _
    $region21: #{tpu_custom_call.1} parent=1 // pred_fallthru
      _
    // Predicated region
    $region22: #{tpu_custom_call.1} parent=1 // pred_check
      _
    $region23: #{tpu_custom_call.1} parent=1 // pred_check_branch
      %59 = sbr.rel (0) target = $region25
    $region24: #{tpu_custom_call.1} parent=1 // pred_region
      %s61 = ssub.s32 1024, 1024
      %62 = vsyncadd [#allocation9], %s61
      %s63 = sshll.u32 [#allocation8], 4
      %s64 = int_to_ptr.vmem [resolvable:$true] %s63
      %69 = dma.hbm_to_vmem [thread:$0]  %s5, 1024, %s64, [#allocation9], 64, 64, 4
    $region25: #{tpu_custom_call.1} parent=1 // pred_fallthru
      _
    // Predicated region
    $region26: #{tpu_custom_call.1} parent=1 // pred_check
      _
    $region27: #{tpu_custom_call.1} parent=1 // pred_check_branch
      %71 = sbr.rel (0) target = $region29
    $region28: #{tpu_custom_call.1} parent=1 // pred_region
      _
    $region29: #{tpu_custom_call.1} parent=1 // pred_fallthru
      _
    // Predicated region
    $region30: #{tpu_custom_call.1} parent=1 // pred_check
      _
    $region31: #{tpu_custom_call.1} parent=1 // pred_check_branch
      %73 = sbr.rel (0) target = $region33
    $region32: #{tpu_custom_call.1} parent=1 // pred_region
      %s75 = ssub.s32 1024, 1024
      %76 = vsyncadd [#allocation9], %s75
      %s77 = sshll.u32 [#allocation10], 4
      %s78 = int_to_ptr.vmem [resolvable:$true] %s77
      %83 = dma.hbm_to_vmem [thread:$0]  %s7, 1024, %s78, [#allocation9], 64, 64, 4
    $region33: #{tpu_custom_call.1} parent=1 // pred_fallthru
      _
    // Predicated region
    $region34: #{tpu_custom_call.1} parent=1 // pred_check
      _
    $region35: #{tpu_custom_call.1} parent=1 // pred_check_branch
      %85 = sbr.rel (0) target = $region37
    $region36: #{tpu_custom_call.1} parent=1 // pred_region
      _
    $region37: #{tpu_custom_call.1} parent=1 // pred_fallthru
      _
    // Predicated region
    $region38: #{tpu_custom_call.1} parent=1 // pred_check
      _
    $region39: #{tpu_custom_call.1} parent=1 // pred_check_branch
      %87 = sbr.rel (0) target = $region41
    $region40: #{tpu_custom_call.1} parent=1 // pred_region
      %88 = dma.done [#allocation3], 256
    $region41: #{tpu_custom_call.1} parent=1 // pred_fallthru
      _
    // Predicated region
    $region42: #{tpu_custom_call.1} parent=1 // pred_check
      _
    $region43: #{tpu_custom_call.1} parent=1 // pred_check_branch
      %90 = sbr.rel (0) target = $region45
    $region44: #{tpu_custom_call.1} parent=1 // pred_region
      %91 = dma.done [#allocation6], 1024
    $region45: #{tpu_custom_call.1} parent=1 // pred_fallthru
      _
    // Predicated region
    $region46: #{tpu_custom_call.1} parent=1 // pred_check
      _
    $region47: #{tpu_custom_call.1} parent=1 // pred_check_branch
      %93 = sbr.rel (0) target = $region49
    $region48: #{tpu_custom_call.1} parent=1 // pred_region
      %94 = dma.done [#allocation6], 1024
    $region49: #{tpu_custom_call.1} parent=1 // pred_fallthru
      _
    // Predicated region
    $region50: #{tpu_custom_call.1} parent=1 // pred_check
      _
    $region51: #{tpu_custom_call.1} parent=1 // pred_check_branch
      %96 = sbr.rel (0) target = $region53
    $region52: #{tpu_custom_call.1} parent=1 // pred_region
      %97 = dma.done [#allocation9], 1024
    $region53: #{tpu_custom_call.1} parent=1 // pred_fallthru
      _
    // Predicated region
    $region54: #{tpu_custom_call.1} parent=1 // pred_check
      _
    $region55: #{tpu_custom_call.1} parent=1 // pred_check_branch
      %99 = sbr.rel (0) target = $region57
    $region56: #{tpu_custom_call.1} parent=1 // pred_region
      %100 = dma.done [#allocation9], 1024
    $region57: #{tpu_custom_call.1} parent=1 // pred_fallthru
      _
    %v102 = vld [vmem:[#allocation2] sm:$0xff]
    %v103 = vld [vmem:[#allocation2 + $0x8] sm:$0xff]
    %v104 = vpack.c.bf16 %v103, %v102
    %v105 = vld [vmem:[#allocation5] sm:$0xf]
    %v106 = vld [vmem:[#allocation5 + $0x4] sm:$0xf]
    %v107 = vld [vmem:[#allocation5 + $0x8] sm:$0xf]
    %v108 = vld [vmem:[#allocation5 + $0xc] sm:$0xf]
    %v109 = vld [vmem:[#allocation5 + $0x10] sm:$0xf]
    %v110 = vld [vmem:[#allocation5 + $0x14] sm:$0xf]
    %v111 = vld [vmem:[#allocation5 + $0x18] sm:$0xf]
    %v112 = vld [vmem:[#allocation5 + $0x1c] sm:$0xf]
    %v113 = vld [vmem:[#allocation5 + $0x20] sm:$0xf]
    %v114 = vld [vmem:[#allocation5 + $0x24] sm:$0xf]
    %v115 = vld [vmem:[#allocation5 + $0x28] sm:$0xf]
    %v116 = vld [vmem:[#allocation5 + $0x2c] sm:$0xf]
    %v117 = vld [vmem:[#allocation5 + $0x30] sm:$0xf]
    %v118 = vld [vmem:[#allocation5 + $0x34] sm:$0xf]
    %v119 = vld [vmem:[#allocation5 + $0x38] sm:$0xf]
    %v120 = vld [vmem:[#allocation5 + $0x3c] sm:$0xf]
    %v121 = vld [vmem:[%s2] sm:$0x1]
    %v123 = vlaneseq
    %v124 = vshrl.u32 %v123, 7
    %v125 = vsub.s32 0, %v124
    %v126 = vrot.slane %v121, %v125
    %v144 = vunpack.c.l.b16 %v105
    %v145 = vunpack.c.l.b16 %v106
    %v146 = vunpack.c.l.b16 %v107
    %v147 = vunpack.c.l.b16 %v108
    %v148 = vunpack.c.l.b16 %v109
    %v149 = vunpack.c.l.b16 %v110
    %v150 = vunpack.c.l.b16 %v111
    %v151 = vunpack.c.l.b16 %v112
    %v152 = vunpack.c.l.b16 %v113
    %v153 = vunpack.c.l.b16 %v114
    %v154 = vunpack.c.l.b16 %v115
    %v155 = vunpack.c.l.b16 %v116
    %v156 = vunpack.c.l.b16 %v117
    %v157 = vunpack.c.l.b16 %v118
    %v158 = vunpack.c.l.b16 %v119
    %v159 = vunpack.c.l.b16 %v120
    %v160 = vpack.c.b16 %v145, %v144
    %v161 = vpack.c.b16 %v147, %v146
    %v162 = vpack.c.b16 %v149, %v148
    %v163 = vpack.c.b16 %v151, %v150
    %v164 = vpack.c.b16 %v153, %v152
    %v165 = vpack.c.b16 %v155, %v154
    %v166 = vpack.c.b16 %v157, %v156
    %v167 = vpack.c.b16 %v159, %v158
    %176 = vmatprep.subr.bf16.mxu0 0
    %177 = vmatpush1.bf16.msra.mxu0 %v160
    %178 = vmatprep.subr.bf16.mxu0 0
    %179 = vmatpush1.bf16.msra.mxu0 %v161
    %180 = vmatprep.subr.bf16.mxu0 0
    %181 = vmatpush1.bf16.msra.mxu0 %v162
    %182 = vmatprep.subr.bf16.mxu0 0
    %183 = vmatpush1.bf16.msra.mxu0 %v163
    %184 = vmatprep.subr.bf16.mxu0 0
    %185 = vmatpush1.bf16.msra.mxu0 %v164
    %186 = vmatprep.subr.bf16.mxu0 0
    %187 = vmatpush1.bf16.msra.mxu0 %v165
    %188 = vmatprep.subr.bf16.mxu0 0
    %189 = vmatpush1.bf16.msra.mxu0 %v166
    %190 = vmatprep.subr.bf16.mxu0 0
    %191 = vmatpush1.bf16.msra.mxu0 %v167
    %192 = vmatprep.subr.bf16.mxu0 0
    %193 = vmatpush1.bf16.msra.mxu0 0
    %194 = vmatprep.subr.bf16.mxu0 0
    %195 = vmatpush1.bf16.msra.mxu0 0
    %196 = vmatprep.subr.bf16.mxu0 0
    %197 = vmatpush1.bf16.msra.mxu0 0
    %198 = vmatprep.subr.bf16.mxu0 0
    %199 = vmatpush1.bf16.msra.mxu0 0
    %200 = vmatprep.subr.bf16.mxu0 0
    %201 = vmatpush1.bf16.msra.mxu0 0
    %202 = vmatprep.subr.bf16.mxu0 0
    %203 = vmatpush1.bf16.msra.mxu0 0
    %204 = vmatprep.subr.bf16.mxu0 0
    %205 = vmatpush1.bf16.msra.mxu0 0
    %206 = vmatprep.subr.bf16.mxu0 0
    %207 = vmatpush1.bf16.msra.mxu0 0
    %208 = vmatprep.mubr.bf16.mxu0 0
    %209 = vmatmul.mubr.bf16.gmra.mrb[0].mxu0 %v104
    %v210 = vpop.f32.mrb[0].mxu0
    %v211 = vadd.f32 %v126, %v210
    %v212 = vpop.f32.mrb[0].mxu0
    %v213 = vpop.f32.mrb[0].mxu0
    %v214 = vadd.f32 %v126, %v213
    %v215 = vpop.f32.mrb[0].mxu0
    %216 = vdwg.mxu0
    %v217 = vmax.f32 %v211, 0.0
    %v218 = vmax.f32 %v214, 0.0
    %v219 = vpack.c.bf16 %v218, %v217
    %v220 = vld [vmem:[#allocation7] sm:$0xf]
    %v221 = vld [vmem:[#allocation7 + $0x4] sm:$0xf]
    %v222 = vld [vmem:[#allocation7 + $0x8] sm:$0xf]
    %v223 = vld [vmem:[#allocation7 + $0xc] sm:$0xf]
    %v224 = vld [vmem:[#allocation7 + $0x10] sm:$0xf]
    %v225 = vld [vmem:[#allocation7 + $0x14] sm:$0xf]
    %v226 = vld [vmem:[#allocation7 + $0x18] sm:$0xf]
    %v227 = vld [vmem:[#allocation7 + $0x1c] sm:$0xf]
    %v228 = vld [vmem:[#allocation7 + $0x20] sm:$0xf]
    %v229 = vld [vmem:[#allocation7 + $0x24] sm:$0xf]
    %v230 = vld [vmem:[#allocation7 + $0x28] sm:$0xf]
    %v231 = vld [vmem:[#allocation7 + $0x2c] sm:$0xf]
    %v232 = vld [vmem:[#allocation7 + $0x30] sm:$0xf]
    %v233 = vld [vmem:[#allocation7 + $0x34] sm:$0xf]
    %v234 = vld [vmem:[#allocation7 + $0x38] sm:$0xf]
    %v235 = vld [vmem:[#allocation7 + $0x3c] sm:$0xf]
    %v236 = vld [vmem:[%s4] sm:$0x1]
    %v238 = vlaneseq
    %v239 = vshrl.u32 %v238, 7
    %v240 = vsub.s32 0, %v239
    %v241 = vrot.slane %v236, %v240
    %v259 = vunpack.c.l.b16 %v220
    %v260 = vunpack.c.l.b16 %v221
    %v261 = vunpack.c.l.b16 %v222
    %v262 = vunpack.c.l.b16 %v223
    %v263 = vunpack.c.l.b16 %v224
    %v264 = vunpack.c.l.b16 %v225
    %v265 = vunpack.c.l.b16 %v226
    %v266 = vunpack.c.l.b16 %v227
    %v267 = vunpack.c.l.b16 %v228
    %v268 = vunpack.c.l.b16 %v229
    %v269 = vunpack.c.l.b16 %v230
    %v270 = vunpack.c.l.b16 %v231
    %v271 = vunpack.c.l.b16 %v232
    %v272 = vunpack.c.l.b16 %v233
    %v273 = vunpack.c.l.b16 %v234
    %v274 = vunpack.c.l.b16 %v235
    %v275 = vpack.c.b16 %v260, %v259
    %v276 = vpack.c.b16 %v262, %v261
    %v277 = vpack.c.b16 %v264, %v263
    %v278 = vpack.c.b16 %v266, %v265
    %v279 = vpack.c.b16 %v268, %v267
    %v280 = vpack.c.b16 %v270, %v269
    %v281 = vpack.c.b16 %v272, %v271
    %v282 = vpack.c.b16 %v274, %v273
    %291 = vmatprep.subr.bf16.mxu0 0
    %292 = vmatpush1.bf16.msra.mxu0 %v275
    %293 = vmatprep.subr.bf16.mxu0 0
    %294 = vmatpush1.bf16.msra.mxu0 %v276
    %295 = vmatprep.subr.bf16.mxu0 0
    %296 = vmatpush1.bf16.msra.mxu0 %v277
    %297 = vmatprep.subr.bf16.mxu0 0
    %298 = vmatpush1.bf16.msra.mxu0 %v278
    %299 = vmatprep.subr.bf16.mxu0 0
    %300 = vmatpush1.bf16.msra.mxu0 %v279
    %301 = vmatprep.subr.bf16.mxu0 0
    %302 = vmatpush1.bf16.msra.mxu0 %v280
    %303 = vmatprep.subr.bf16.mxu0 0
    %304 = vmatpush1.bf16.msra.mxu0 %v281
    %305 = vmatprep.subr.bf16.mxu0 0
    %306 = vmatpush1.bf16.msra.mxu0 %v282
    %307 = vmatprep.subr.bf16.mxu0 0
    %308 = vmatpush1.bf16.msra.mxu0 0
    %309 = vmatprep.subr.bf16.mxu0 0
    %310 = vmatpush1.bf16.msra.mxu0 0
    %311 = vmatprep.subr.bf16.mxu0 0
    %312 = vmatpush1.bf16.msra.mxu0 0
    %313 = vmatprep.subr.bf16.mxu0 0
    %314 = vmatpush1.bf16.msra.mxu0 0
    %315 = vmatprep.subr.bf16.mxu0 0
    %316 = vmatpush1.bf16.msra.mxu0 0
    %317 = vmatprep.subr.bf16.mxu0 0
    %318 = vmatpush1.bf16.msra.mxu0 0
    %319 = vmatprep.subr.bf16.mxu0 0
    %320 = vmatpush1.bf16.msra.mxu0 0
    %321 = vmatprep.subr.bf16.mxu0 0
    %322 = vmatpush1.bf16.msra.mxu0 0
    %323 = vmatprep.mubr.bf16.mxu0 0
    %324 = vmatmul.mubr.bf16.gmra.mrb[0].mxu0 %v219
    %v325 = vpop.f32.mrb[0].mxu0
    %v326 = vadd.f32 %v241, %v325
    %v327 = vpop.f32.mrb[0].mxu0
    %v328 = vpop.f32.mrb[0].mxu0
    %v329 = vadd.f32 %v241, %v328
    %v330 = vpop.f32.mrb[0].mxu0
    %331 = vdwg.mxu0
    %v332 = vmax.f32 %v326, 0.0
    %v333 = vmax.f32 %v329, 0.0
    %v334 = vpack.c.bf16 %v333, %v332
    %v335 = vld [vmem:[#allocation8] sm:$0xf]
    %v336 = vld [vmem:[#allocation8 + $0x4] sm:$0xf]
    %v337 = vld [vmem:[#allocation8 + $0x8] sm:$0xf]
    %v338 = vld [vmem:[#allocation8 + $0xc] sm:$0xf]
    %v339 = vld [vmem:[#allocation8 + $0x10] sm:$0xf]
    %v340 = vld [vmem:[#allocation8 + $0x14] sm:$0xf]
    %v341 = vld [vmem:[#allocation8 + $0x18] sm:$0xf]
    %v342 = vld [vmem:[#allocation8 + $0x1c] sm:$0xf]
    %v343 = vld [vmem:[#allocation8 + $0x20] sm:$0xf]
    %v344 = vld [vmem:[#allocation8 + $0x24] sm:$0xf]
    %v345 = vld [vmem:[#allocation8 + $0x28] sm:$0xf]
    %v346 = vld [vmem:[#allocation8 + $0x2c] sm:$0xf]
    %v347 = vld [vmem:[#allocation8 + $0x30] sm:$0xf]
    %v348 = vld [vmem:[#allocation8 + $0x34] sm:$0xf]
    %v349 = vld [vmem:[#allocation8 + $0x38] sm:$0xf]
    %v350 = vld [vmem:[#allocation8 + $0x3c] sm:$0xf]
    %v351 = vld [vmem:[%s6] sm:$0x1]
    %v353 = vlaneseq
    %v354 = vshrl.u32 %v353, 7
    %v355 = vsub.s32 0, %v354
    %v356 = vrot.slane %v351, %v355
    %v374 = vunpack.c.l.b16 %v335
    %v375 = vunpack.c.l.b16 %v336
    %v376 = vunpack.c.l.b16 %v337
    %v377 = vunpack.c.l.b16 %v338
    %v378 = vunpack.c.l.b16 %v339
    %v379 = vunpack.c.l.b16 %v340
    %v380 = vunpack.c.l.b16 %v341
    %v381 = vunpack.c.l.b16 %v342
    %v382 = vunpack.c.l.b16 %v343
    %v383 = vunpack.c.l.b16 %v344
    %v384 = vunpack.c.l.b16 %v345
    %v385 = vunpack.c.l.b16 %v346
    %v386 = vunpack.c.l.b16 %v347
    %v387 = vunpack.c.l.b16 %v348
    %v388 = vunpack.c.l.b16 %v349
    %v389 = vunpack.c.l.b16 %v350
    %v390 = vpack.c.b16 %v375, %v374
    %v391 = vpack.c.b16 %v377, %v376
    %v392 = vpack.c.b16 %v379, %v378
    %v393 = vpack.c.b16 %v381, %v380
    %v394 = vpack.c.b16 %v383, %v382
    %v395 = vpack.c.b16 %v385, %v384
    %v396 = vpack.c.b16 %v387, %v386
    %v397 = vpack.c.b16 %v389, %v388
    %406 = vmatprep.subr.bf16.mxu0 0
    %407 = vmatpush1.bf16.msra.mxu0 %v390
    %408 = vmatprep.subr.bf16.mxu0 0
    %409 = vmatpush1.bf16.msra.mxu0 %v391
    %410 = vmatprep.subr.bf16.mxu0 0
    %411 = vmatpush1.bf16.msra.mxu0 %v392
    %412 = vmatprep.subr.bf16.mxu0 0
    %413 = vmatpush1.bf16.msra.mxu0 %v393
    %414 = vmatprep.subr.bf16.mxu0 0
    %415 = vmatpush1.bf16.msra.mxu0 %v394
    %416 = vmatprep.subr.bf16.mxu0 0
    %417 = vmatpush1.bf16.msra.mxu0 %v395
    %418 = vmatprep.subr.bf16.mxu0 0
    %419 = vmatpush1.bf16.msra.mxu0 %v396
    %420 = vmatprep.subr.bf16.mxu0 0
    %421 = vmatpush1.bf16.msra.mxu0 %v397
    %422 = vmatprep.subr.bf16.mxu0 0
    %423 = vmatpush1.bf16.msra.mxu0 0
    %424 = vmatprep.subr.bf16.mxu0 0
    %425 = vmatpush1.bf16.msra.mxu0 0
    %426 = vmatprep.subr.bf16.mxu0 0
    %427 = vmatpush1.bf16.msra.mxu0 0
    %428 = vmatprep.subr.bf16.mxu0 0
    %429 = vmatpush1.bf16.msra.mxu0 0
    %430 = vmatprep.subr.bf16.mxu0 0
    %431 = vmatpush1.bf16.msra.mxu0 0
    %432 = vmatprep.subr.bf16.mxu0 0
    %433 = vmatpush1.bf16.msra.mxu0 0
    %434 = vmatprep.subr.bf16.mxu0 0
    %435 = vmatpush1.bf16.msra.mxu0 0
    %436 = vmatprep.subr.bf16.mxu0 0
    %437 = vmatpush1.bf16.msra.mxu0 0
    %438 = vmatprep.mubr.bf16.mxu0 0
    %439 = vmatmul.mubr.bf16.gmra.mrb[0].mxu0 %v334
    %v440 = vpop.f32.mrb[0].mxu0
    %v441 = vadd.f32 %v356, %v440
    %v442 = vpop.f32.mrb[0].mxu0
    %v443 = vpop.f32.mrb[0].mxu0
    %v444 = vadd.f32 %v356, %v443
    %v445 = vpop.f32.mrb[0].mxu0
    %446 = vdwg.mxu0
    %v447 = vmax.f32 %v441, 0.0
    %v448 = vmax.f32 %v444, 0.0
    %v449 = vpack.c.bf16 %v448, %v447
    %v450 = vld [vmem:[#allocation10] sm:$0xf]
    %v451 = vld [vmem:[#allocation10 + $0x4] sm:$0xf]
    %v452 = vld [vmem:[#allocation10 + $0x8] sm:$0xf]
    %v453 = vld [vmem:[#allocation10 + $0xc] sm:$0xf]
    %v454 = vld [vmem:[#allocation10 + $0x10] sm:$0xf]
    %v455 = vld [vmem:[#allocation10 + $0x14] sm:$0xf]
    %v456 = vld [vmem:[#allocation10 + $0x18] sm:$0xf]
    %v457 = vld [vmem:[#allocation10 + $0x1c] sm:$0xf]
    %v458 = vld [vmem:[#allocation10 + $0x20] sm:$0xf]
    %v459 = vld [vmem:[#allocation10 + $0x24] sm:$0xf]
    %v460 = vld [vmem:[#allocation10 + $0x28] sm:$0xf]
    %v461 = vld [vmem:[#allocation10 + $0x2c] sm:$0xf]
    %v462 = vld [vmem:[#allocation10 + $0x30] sm:$0xf]
    %v463 = vld [vmem:[#allocation10 + $0x34] sm:$0xf]
    %v464 = vld [vmem:[#allocation10 + $0x38] sm:$0xf]
    %v465 = vld [vmem:[#allocation10 + $0x3c] sm:$0xf]
    %v466 = vld [vmem:[%s8] sm:$0x1]
    %v468 = vlaneseq
    %v469 = vshrl.u32 %v468, 7
    %v470 = vsub.s32 0, %v469
    %v471 = vrot.slane %v466, %v470
    %v489 = vunpack.c.l.b16 %v450
    %v490 = vunpack.c.l.b16 %v451
    %v491 = vunpack.c.l.b16 %v452
    %v492 = vunpack.c.l.b16 %v453
    %v493 = vunpack.c.l.b16 %v454
    %v494 = vunpack.c.l.b16 %v455
    %v495 = vunpack.c.l.b16 %v456
    %v496 = vunpack.c.l.b16 %v457
    %v497 = vunpack.c.l.b16 %v458
    %v498 = vunpack.c.l.b16 %v459
    %v499 = vunpack.c.l.b16 %v460
    %v500 = vunpack.c.l.b16 %v461
    %v501 = vunpack.c.l.b16 %v462
    %v502 = vunpack.c.l.b16 %v463
    %v503 = vunpack.c.l.b16 %v464
    %v504 = vunpack.c.l.b16 %v465
    %v505 = vpack.c.b16 %v490, %v489
    %v506 = vpack.c.b16 %v492, %v491
    %v507 = vpack.c.b16 %v494, %v493
    %v508 = vpack.c.b16 %v496, %v495
    %v509 = vpack.c.b16 %v498, %v497
    %v510 = vpack.c.b16 %v500, %v499
    %v511 = vpack.c.b16 %v502, %v501
    %v512 = vpack.c.b16 %v504, %v503
    %521 = vmatprep.subr.bf16.mxu0 0
    %522 = vmatpush1.bf16.msra.mxu0 %v505
    %523 = vmatprep.subr.bf16.mxu0 0
    %524 = vmatpush1.bf16.msra.mxu0 %v506
    %525 = vmatprep.subr.bf16.mxu0 0
    %526 = vmatpush1.bf16.msra.mxu0 %v507
    %527 = vmatprep.subr.bf16.mxu0 0
    %528 = vmatpush1.bf16.msra.mxu0 %v508
    %529 = vmatprep.subr.bf16.mxu0 0
    %530 = vmatpush1.bf16.msra.mxu0 %v509
    %531 = vmatprep.subr.bf16.mxu0 0
    %532 = vmatpush1.bf16.msra.mxu0 %v510
    %533 = vmatprep.subr.bf16.mxu0 0
    %534 = vmatpush1.bf16.msra.mxu0 %v511
    %535 = vmatprep.subr.bf16.mxu0 0
    %536 = vmatpush1.bf16.msra.mxu0 %v512
    %537 = vmatprep.subr.bf16.mxu0 0
    %538 = vmatpush1.bf16.msra.mxu0 0
    %539 = vmatprep.subr.bf16.mxu0 0
    %540 = vmatpush1.bf16.msra.mxu0 0
    %541 = vmatprep.subr.bf16.mxu0 0
    %542 = vmatpush1.bf16.msra.mxu0 0
    %543 = vmatprep.subr.bf16.mxu0 0
    %544 = vmatpush1.bf16.msra.mxu0 0
    %545 = vmatprep.subr.bf16.mxu0 0
    %546 = vmatpush1.bf16.msra.mxu0 0
    %547 = vmatprep.subr.bf16.mxu0 0
    %548 = vmatpush1.bf16.msra.mxu0 0
    %549 = vmatprep.subr.bf16.mxu0 0
    %550 = vmatpush1.bf16.msra.mxu0 0
    %551 = vmatprep.subr.bf16.mxu0 0
    %552 = vmatpush1.bf16.msra.mxu0 0
    %553 = vmatprep.mubr.bf16.mxu0 0
    %554 = vmatmul.mubr.bf16.gmra.mrb[0].mxu0 %v449
    %v555 = vpop.f32.mrb[0].mxu0
    %v556 = vadd.f32 %v471, %v555
    %v557 = vpop.f32.mrb[0].mxu0
    %v558 = vpop.f32.mrb[0].mxu0
    %v559 = vadd.f32 %v471, %v558
    %v560 = vpop.f32.mrb[0].mxu0
    %561 = vdwg.mxu0
    %562 = vmax.xlane.f32.xlu0 %v556
    %v563 = vpop.xlane.xlu0 %562
    %564 = vmax.xlane.f32.xlu0 %v559
    %v565 = vpop.xlane.xlu0 %564
    %v566 = vsub.f32 %v556, %v563
    %v567 = vsub.f32 %v559, %v565
    %v568 = vmul.f32 %v566, 1.442695
    %v569 = vpow.pop %v568
    %v570 = vmul.f32 %v567, 1.442695
    %v571 = vpow.pop %v570
    %572 = vadd.xlane.f32.xlu0 %v569
    %v573 = vpop.xlane.xlu0 %572
    %574 = vadd.xlane.f32.xlu0 %v571
    %v575 = vpop.xlane.xlu0 %574
    %v576 = vrcp.pop %v573
    %v577 = vmul.f32 %v569, %v576
    %v578 = vrcp.pop %v575
    %v579 = vmul.f32 %v571, %v578
    %580 = vst [vmem:[#allocation11] sm:$0xff] %v577
    %581 = vst [vmem:[#allocation11 + $0x8] sm:$0xff] %v579
    // Predicated region
    $region58: #{tpu_custom_call.1} parent=1 // pred_check
      _
    $region59: #{tpu_custom_call.1} parent=1 // pred_check_branch
      %583 = sbr.rel (0) target = $region61
    $region60: #{tpu_custom_call.1} parent=1 // pred_region
      %s585 = ssub.s32 256, 256
      %586 = vsyncadd [#allocation4], %s585
      %s587 = sshll.u32 [#allocation11], 4
      %s588 = int_to_ptr.vmem [resolvable:$true] %s587
      %593 = dma.vmem_to_hbm [thread:$0]  %s588, 256, %s9, [#allocation4], 128, 128, 8
    $region61: #{tpu_custom_call.1} parent=1 // pred_fallthru
      _
    // Predicated region
    $region62: #{tpu_custom_call.1} parent=1 // pred_check
      _
    $region63: #{tpu_custom_call.1} parent=1 // pred_check_branch
      %595 = sbr.rel (0) target = $region65
    $region64: #{tpu_custom_call.1} parent=1 // pred_region
      %596 = dma.done [#allocation4], 256
    $region65: #{tpu_custom_call.1} parent=1 // pred_fallthru
      _
    %597 = vsyncpa [#allocation3], 1
    %598 = vsyncpa [#allocation6], 1
    %599 = vsyncpa [#allocation9], 1
    %600 = vsyncpa [#allocation4], 1

</llo_original>
